<compile_context>
chip_gen: v5e
topology: v5e:2x2
jax: 0.10.0
libtpu: 0.0.40
codegen_flags: <defaults>
</compile_context>

<pallas_src>
import jax
import jax.numpy as jnp
from jax.experimental import pallas as pl
from jax.experimental.pallas import tpu as pltpu


_BN_EPS = 1e-5


def _fused_kernel(x1_ref, x2_ref, w_ref, gamma_ref, beta_ref, o_ref):
    # add + ReLU in channels-major (Cin, P) layout: pure VPU elementwise.
    a = jnp.maximum(x1_ref[...] + x2_ref[...], 0.0)

    # 1x1 conv == matmul on the MXU: (Cout_tile, Cin) @ (Cin, P) -> (Cout_tile, P).
    # Kept f32 (with f32 accumulation): the kernel is latency/DMA bound at this
    # size and a bf16 operand cast does not hold the 1e-3 tolerance (review caveat).
    y = jnp.dot(w_ref[...], a, preferred_element_type=jnp.float32)

    # BatchNorm2d training-mode forward: per-output-channel batch statistics over
    # the P = N*H*W axis, computed in a single pass (sum + sum of squares).
    # NOTE: P is never tiled across the grid, so the block's last dim IS the true P.
    p = y.shape[1]
    inv_p = 1.0 / p
    s = jnp.sum(y, axis=1, keepdims=True)
    ssq = jnp.sum(y * y, axis=1, keepdims=True)
    mean = s * inv_p
    var = jnp.maximum(ssq * inv_p - mean * mean, 0.0)        # clamp cancellation
    scale = jax.lax.rsqrt(var + _BN_EPS) * gamma_ref[...]    # fold gamma once per row
    o_ref[...] = ((y - mean) * scale + beta_ref[...]).astype(o_ref.dtype)


def _use_cout_tiling():
    # Shard Cout across TensorCores only where it helps (v7x has 2 TCs per chip);
    # on v5e/v6e keep grid=(1,) to avoid per-grid-step overhead.
    try:
        kind = jax.devices()[0].device_kind.lower()
    except Exception:
        return False
    return "v7" in kind


def fused_add_relu_conv1x1_bn(x151, x159, weight, gamma, beta, tile_cout=None):
    """x151, x159: (N, Cin, H, W) f32. weight: (Cout, Cin) from a 1x1 conv, no bias.
    gamma, beta: (Cout,). Returns (N, Cout, H, W) f32 (BN training-mode forward)."""
    n, c_in, h, w = x151.shape
    c_out = weight.shape[0]
    p = n * h * w

    if tile_cout is None:
        tile_cout = _use_cout_tiling()

    # Channels-major (Cin, P): a pure (free) reshape when N == 1.
    if n == 1:
        x1 = x151.reshape(c_in, p)
        x2 = x159.reshape(c_in, p)
    else:
        x1 = jnp.transpose(x151, (1, 0, 2, 3)).reshape(c_in, p)
        x2 = jnp.transpose(x159, (1, 0, 2, 3)).reshape(c_in, p)

    w_mat = weight                      # already (Cout, Cin): no transpose needed
    gamma2 = gamma.reshape(c_out, 1)
    beta2 = beta.reshape(c_out, 1)

    cout_tile = 128 if tile_cout else c_out
    c_out_pad = pl.cdiv(c_out, cout_tile) * cout_tile
    grid_size = c_out_pad // cout_tile
    pad = c_out_pad - c_out
    if pad:
        w_mat = jnp.pad(w_mat, ((0, pad), (0, 0)))       # zero rows -> zero output rows
        gamma2 = jnp.pad(gamma2, ((0, pad), (0, 0)))
        beta2 = jnp.pad(beta2, ((0, pad), (0, 0)))

    out_cp = pl.pallas_call(
        _fused_kernel,
        out_shape=jax.ShapeDtypeStruct((c_out_pad, p), jnp.float32),
        grid=(grid_size,),
        in_specs=[
            pl.BlockSpec((c_in, p), lambda i: (0, 0)),          # x1: same block each step
            pl.BlockSpec((c_in, p), lambda i: (0, 0)),          # x2
            pl.BlockSpec((cout_tile, c_in), lambda i: (i, 0)),  # weight tile over Cout
            pl.BlockSpec((cout_tile, 1), lambda i: (i, 0)),     # gamma
            pl.BlockSpec((cout_tile, 1), lambda i: (i, 0)),     # beta
        ],
        out_specs=pl.BlockSpec((cout_tile, p), lambda i: (i, 0)),
        compiler_params=pltpu.CompilerParams(
            dimension_semantics=("parallel",),   # Cout tiles are fully independent
        ),
    )(x1, x2, w_mat, gamma2, beta2)

    out_cp = out_cp[:c_out]              # drop padded channels (contiguous prefix slice)
    if n == 1:
        return out_cp.reshape(1, c_out, h, w)
    return jnp.transpose(out_cp.reshape(c_out, n, h, w), (1, 0, 2, 3))


def _reference(x151, x159, weight, gamma, beta):
    a = jnp.maximum(x151 + x159, 0.0)
    y = jnp.einsum('nchw,oc->nohw', a, weight)            # 1x1 conv, no bias
    mean = jnp.mean(y, axis=(0, 2, 3), keepdims=True)
    var = jnp.mean((y - mean) ** 2, axis=(0, 2, 3), keepdims=True)
    return (y - mean) / jnp.sqrt(var + _BN_EPS) * gamma.reshape(1, -1, 1, 1) \
        + beta.reshape(1, -1, 1, 1)


# TODO(synk): BatchNorm2d running_mean/running_var momentum updates are not
# produced; only the training-mode forward output (batch statistics) is computed.

if __name__ == "__main__":
    key = jax.random.PRNGKey(0)
    k1, k2, k3, k4, k5 = jax.random.split(key, 5)

    N, C, H, W = 1, 400, 7, 7
    x151 = jax.random.normal(k1, (N, C, H, W), dtype=jnp.float32)
    x159 = jax.random.normal(k2, (N, C, H, W), dtype=jnp.float32)

    # Conv2d(400, 400, kernel_size=1, bias=False) -> weight (400, 400, 1, 1) squeezed
    weight = jax.random.normal(k3, (C, C), dtype=jnp.float32) * 0.05
    # BatchNorm2d(400) affine params
    gamma = 1.0 + 0.1 * jax.random.normal(k4, (C,), dtype=jnp.float32)
    beta = 0.1 * jax.random.normal(k5, (C,), dtype=jnp.float32)

    ref = _reference(x151, x159, weight, gamma, beta)

    # Auto path: Cout-tiled grid on v7x (2 TCs), single whole-array block on v5e/v6e.
    out = jax.block_until_ready(
        fused_add_relu_conv1x1_bn(x151, x159, weight, gamma, beta))
    assert out.shape == (N, C, H, W)
    assert jnp.allclose(out, ref, atol=1e-3, rtol=1e-3)

    # Explicit Cout-tiled path (what v7x uses); also correct on single-TC chips.
    out_tiled = jax.block_until_ready(
        fused_add_relu_conv1x1_bn(x151, x159, weight, gamma, beta, tile_cout=True))
    assert out_tiled.shape == (N, C, H, W)
    assert jnp.allclose(out_tiled, ref, atol=1e-3, rtol=1e-3)

    print("KERNEL_OK")
</pallas_src>

<mosaic_0001>
module attributes {stable_mosaic.version = 11 : i64} {
  func.func @_fused_kernel(%arg0: i32, %arg1: memref<400x49xf32, #tpu.memory_space<vmem>>, %arg2: memref<400x49xf32, #tpu.memory_space<vmem>>, %arg3: memref<400x400xf32, #tpu.memory_space<vmem>>, %arg4: memref<400x1xf32, #tpu.memory_space<vmem>>, %arg5: memref<400x1xf32, #tpu.memory_space<vmem>>, %arg6: memref<400x49xf32, #tpu.memory_space<vmem>>) attributes {dimension_semantics = [#tpu.dimension_semantics<parallel>], iteration_bounds = array<i64: 1>, scalar_prefetch = 0 : i64, scratch_operands = 0 : i64, tpu.core_type = #tpu.core_type<tc>, window_params = [{pipeline_mode = #tpu.pipeline_mode<synchronous>, transform_indices = @transform_0, window_bounds = array<i64: 400, 49>}, {pipeline_mode = #tpu.pipeline_mode<synchronous>, transform_indices = @transform_1, window_bounds = array<i64: 400, 49>}, {transform_indices = @transform_2, window_bounds = array<i64: 400, 400>}, {transform_indices = @transform_3, window_bounds = array<i64: 400, 1>}, {transform_indices = @transform_4, window_bounds = array<i64: 400, 1>}, {transform_indices = @transform_5, window_bounds = array<i64: 400, 49>}]} {
    %c0 = arith.constant 0 : index
    %c0_0 = arith.constant 0 : index
    %0 = vector.load %arg1[%c0, %c0_0] : memref<400x49xf32, #tpu.memory_space<vmem>>, vector<400x49xf32>
    %c0_1 = arith.constant 0 : index
    %c0_2 = arith.constant 0 : index
    %1 = vector.load %arg2[%c0_1, %c0_2] : memref<400x49xf32, #tpu.memory_space<vmem>>, vector<400x49xf32>
    %2 = arith.addf %0, %1 : vector<400x49xf32>
    %cst = arith.constant 0.000000e+00 : f32
    %3 = vector.broadcast %cst : f32 to vector<400x49xf32>
    %4 = arith.maximumf %2, %3 : vector<400x49xf32>
    %c0_3 = arith.constant 0 : index
    %c0_4 = arith.constant 0 : index
    %5 = vector.load %arg3[%c0_3, %c0_4] : memref<400x400xf32, #tpu.memory_space<vmem>>, vector<400x400xf32>
    %cst_5 = arith.constant dense<0.000000e+00> : vector<400x49xf32>
    %6 = tpu.matmul %5, %4, %cst_5 {dimension_numbers = #tpu.dot_dimension_numbers<[1], [0], [0], [1], [0, 0, 1, 1], [], []>} : vector<400x400xf32>, vector<400x49xf32>, vector<400x49xf32> -> vector<400x49xf32>
    %cst_6 = arith.constant dense<0.000000e+00> : vector<400xf32>
    %7 = vector.multi_reduction <add>, %6, %cst_6 [1] : vector<400x49xf32> to vector<400xf32>
    %8 = vector.shape_cast %7 : vector<400xf32> to vector<400x1xf32>
    %9 = arith.mulf %6, %6 : vector<400x49xf32>
    %cst_7 = arith.constant dense<0.000000e+00> : vector<400xf32>
    %10 = vector.multi_reduction <add>, %9, %cst_7 [1] : vector<400x49xf32> to vector<400xf32>
    %11 = vector.shape_cast %10 : vector<400xf32> to vector<400x1xf32>
    %cst_8 = arith.constant 0.0204081628 : f32
    %12 = vector.broadcast %cst_8 : f32 to vector<400x1xf32>
    %13 = arith.mulf %8, %12 : vector<400x1xf32>
    %cst_9 = arith.constant 0.0204081628 : f32
    %14 = vector.broadcast %cst_9 : f32 to vector<400x1xf32>
    %15 = arith.mulf %11, %14 : vector<400x1xf32>
    %16 = arith.mulf %13, %13 : vector<400x1xf32>
    %17 = arith.subf %15, %16 : vector<400x1xf32>
    %cst_10 = arith.constant 0.000000e+00 : f32
    %18 = vector.broadcast %cst_10 : f32 to vector<400x1xf32>
    %19 = arith.maximumf %17, %18 : vector<400x1xf32>
    %cst_11 = arith.constant 9.99999974E-6 : f32
    %20 = vector.broadcast %cst_11 : f32 to vector<400x1xf32>
    %21 = arith.addf %19, %20 : vector<400x1xf32>
    %22 = math.rsqrt %21 : vector<400x1xf32>
    %c0_12 = arith.constant 0 : index
    %c0_13 = arith.constant 0 : index
    %23 = vector.load %arg4[%c0_12, %c0_13] : memref<400x1xf32, #tpu.memory_space<vmem>>, vector<400x1xf32>
    %24 = arith.mulf %22, %23 : vector<400x1xf32>
    %25 = vector.broadcast %13 : vector<400x1xf32> to vector<400x49xf32>
    %26 = arith.subf %6, %25 : vector<400x49xf32>
    %27 = vector.broadcast %24 : vector<400x1xf32> to vector<400x49xf32>
    %28 = arith.mulf %26, %27 : vector<400x49xf32>
    %c0_14 = arith.constant 0 : index
    %c0_15 = arith.constant 0 : index
    %29 = vector.load %arg5[%c0_14, %c0_15] : memref<400x1xf32, #tpu.memory_space<vmem>>, vector<400x1xf32>
    %30 = vector.broadcast %29 : vector<400x1xf32> to vector<400x49xf32>
    %31 = arith.addf %28, %30 : vector<400x49xf32>
    %c0_16 = arith.constant 0 : index
    %c0_17 = arith.constant 0 : index
    %32 = vector.load %arg6[%c0_16, %c0_17] : memref<400x49xf32, #tpu.memory_space<vmem>>, vector<400x49xf32>
    tpu.vector_store %arg6[%c0_16, %c0_17], %31 {strides = array<i32>} : memref<400x49xf32, #tpu.memory_space<vmem>>, vector<400x49xf32>,
    return
  }
  func.func @transform_0(%arg0: i32) -> (i32, i32) {
    %c0_i32 = arith.constant 0 : i32
    %c0_i32_0 = arith.constant 0 : i32
    %c0_i32_1 = arith.constant 0 : i32
    return %c0_i32, %c0_i32_0 : i32, i32
  }
  func.func @transform_1(%arg0: i32) -> (i32, i32) {
    %c0_i32 = arith.constant 0 : i32
    %c0_i32_0 = arith.constant 0 : i32
    %c0_i32_1 = arith.constant 0 : i32
    return %c0_i32, %c0_i32_0 : i32, i32
  }
  func.func @transform_2(%arg0: i32) -> (i32, i32) {
    %c0_i32 = arith.constant 0 : i32
    %c0_i32_0 = arith.constant 0 : i32
    return %arg0, %c0_i32 : i32, i32
  }
  func.func @transform_3(%arg0: i32) -> (i32, i32) {
    %c0_i32 = arith.constant 0 : i32
    %c0_i32_0 = arith.constant 0 : i32
    return %arg0, %c0_i32 : i32, i32
  }
  func.func @transform_4(%arg0: i32) -> (i32, i32) {
    %c0_i32 = arith.constant 0 : i32
    %c0_i32_0 = arith.constant 0 : i32
    return %arg0, %c0_i32 : i32, i32
  }
  func.func @transform_5(%arg0: i32) -> (i32, i32) {
    %c0_i32 = arith.constant 0 : i32
    %c0_i32_0 = arith.constant 0 : i32
    return %arg0, %c0_i32 : i32, i32
  }
}

</mosaic_0001>

<llo_original>
// kernel: tpu_custom_call.1
$region0: #{tpu_custom_call.1}
  #allocation0 [shape = 'u32[]', space=smem, size = 0x4, offset = 0x4, fixed_abs, tag = 'smem constant byte address 0x4 - core index']
  #allocation1 [shape = 'u32[72,128]{1,0:T(1,128)}', space=vmem, size = 0x9000, scoped, tag = 'internal scratch']
  %s0 = inlined_call_operand.vmem [shape: f32[400,49], index: 0, kind: input, shape index: {}]
  %s1 = inlined_call_operand.vmem [shape: f32[400,49], index: 1, kind: input, shape index: {}]
  %s2 = inlined_call_operand.hbm [shape: f32[400,400], index: 2, kind: input, shape index: {}]
  %s3 = inlined_call_operand.vmem [shape: f32[400,1], index: 3, kind: input, shape index: {}]
  %s4 = inlined_call_operand.vmem [shape: f32[400,1], index: 4, kind: input, shape index: {}]
  %s5 = inlined_call_operand.vmem [shape: f32[400,49], index: 5, kind: output, shape index: {}]
  %s6 = sld [smem:[#allocation0]]
  $region34: #{tpu_custom_call.1} parent=0
    _
  %s8 = ssub.s32 1, %s6
  %s9 = scalar_select 0, %s8, %s6
  $region1: #{tpu_custom_call.1} parent=0
    #allocation2 [shape = 'u8[819200]{0}', space=vmem, size = 0xc8000, scoped, tag = 'input window, operand 2, single buffered']
    #allocation3 [shape = 's32[1]{0}', space=sflag, size = 0x4, scoped, tag = 'scoped memory for tpu_custom_call.1']
    %10 = vsyncpa [#allocation3], 0
    // Predicated region
    $region2: #{tpu_custom_call.1} parent=1 // pred_check
      _
    $region3: #{tpu_custom_call.1} parent=1 // pred_check_branch
      %12 = sbr.rel (0) target = $region5
    $region4: #{tpu_custom_call.1} parent=1 // pred_region
      _
    $region5: #{tpu_custom_call.1} parent=1 // pred_fallthru
      _
    // Predicated region
    $region6: #{tpu_custom_call.1} parent=1 // pred_check
      _
    $region7: #{tpu_custom_call.1} parent=1 // pred_check_branch
      %14 = sbr.rel (0) target = $region9
    $region8: #{tpu_custom_call.1} parent=1 // pred_region
      _
    $region9: #{tpu_custom_call.1} parent=1 // pred_fallthru
      _
    // Predicated region
    $region10: #{tpu_custom_call.1} parent=1 // pred_check
      _
    $region11: #{tpu_custom_call.1} parent=1 // pred_check_branch
      %16 = sbr.rel (0) target = $region13
    $region12: #{tpu_custom_call.1} parent=1 // pred_region
      %18 = vsyncadd [#allocation3], 0
      %s19 = sshll.u32 %s2, 4
      %s20 = int_to_ptr.hbm [resolvable:$true] %s19
      %s21 = sshll.u32 [#allocation2], 4
      %s22 = int_to_ptr.vmem [resolvable:$true] %s21
      %27 = dma.hbm_to_vmem [thread:$0]  %s20, 25600, %s22, [#allocation3], 512, 512, 32
    $region13: #{tpu_custom_call.1} parent=1 // pred_fallthru
      _
    // Predicated region
    $region14: #{tpu_custom_call.1} parent=1 // pred_check
      _
    $region15: #{tpu_custom_call.1} parent=1 // pred_check_branch
      %29 = sbr.rel (0) target = $region17
    $region16: #{tpu_custom_call.1} parent=1 // pred_region
      _
    $region17: #{tpu_custom_call.1} parent=1 // pred_fallthru
      _
    // Predicated region
    $region18: #{tpu_custom_call.1} parent=1 // pred_check
      _
    $region19: #{tpu_custom_call.1} parent=1 // pred_check_branch
      %31 = sbr.rel (0) target = $region21
    $region20: #{tpu_custom_call.1} parent=1 // pred_region
      _
    $region21: #{tpu_custom_call.1} parent=1 // pred_fallthru
      _
    // Predicated region
    $region22: #{tpu_custom_call.1} parent=1 // pred_check
      _
    $region23: #{tpu_custom_call.1} parent=1 // pred_check_branch
      %33 = sbr.rel (0) target = $region25
    $region24: #{tpu_custom_call.1} parent=1 // pred_region
      %35 = dma.done [#allocation3], 25600
    $region25: #{tpu_custom_call.1} parent=1 // pred_fallthru
      _
    %v36 = vld [vmem:[%s0] sm:$0xff]
    %v37 = vld [vmem:[%s0 + $0x8] sm:$0xff]
    %v38 = vld [vmem:[%s0 + $0x10] sm:$0xff]
    %v39 = vld [vmem:[%s0 + $0x18] sm:$0xff]
    %v40 = vld [vmem:[%s0 + $0x20] sm:$0xff]
    %v41 = vld [vmem:[%s0 + $0x28] sm:$0xff]
    %v42 = vld [vmem:[%s0 + $0x30] sm:$0xff]
    %v43 = vld [vmem:[%s0 + $0x38] sm:$0xff]
    %v44 = vld [vmem:[%s0 + $0x40] sm:$0xff]
    %v45 = vld [vmem:[%s0 + $0x48] sm:$0xff]
    %v46 = vld [vmem:[%s0 + $0x50] sm:$0xff]
    %v47 = vld [vmem:[%s0 + $0x58] sm:$0xff]
    %v48 = vld [vmem:[%s0 + $0x60] sm:$0xff]
    %v49 = vld [vmem:[%s0 + $0x68] sm:$0xff]
    %v50 = vld [vmem:[%s0 + $0x70] sm:$0xff]
    %v51 = vld [vmem:[%s0 + $0x78] sm:$0xff]
    %v52 = vld [vmem:[%s0 + $0x80] sm:$0xff]
    %v53 = vld [vmem:[%s0 + $0x88] sm:$0xff]
    %v54 = vld [vmem:[%s0 + $0x90] sm:$0xff]
    %v55 = vld [vmem:[%s0 + $0x98] sm:$0xff]
    %v56 = vld [vmem:[%s0 + $0xa0] sm:$0xff]
    %v57 = vld [vmem:[%s0 + $0xa8] sm:$0xff]
    %v58 = vld [vmem:[%s0 + $0xb0] sm:$0xff]
    %v59 = vld [vmem:[%s0 + $0xb8] sm:$0xff]
    %v60 = vld [vmem:[%s0 + $0xc0] sm:$0xff]
    %v61 = vld [vmem:[%s0 + $0xc8] sm:$0xff]
    %v62 = vld [vmem:[%s0 + $0xd0] sm:$0xff]
    %v63 = vld [vmem:[%s0 + $0xd8] sm:$0xff]
    %v64 = vld [vmem:[%s0 + $0xe0] sm:$0xff]
    %v65 = vld [vmem:[%s0 + $0xe8] sm:$0xff]
    %v66 = vld [vmem:[%s0 + $0xf0] sm:$0xff]
    %v67 = vld [vmem:[%s0 + $0xf8] sm:$0xff]
    %v68 = vld [vmem:[%s0 + $0x100] sm:$0xff]
    %v69 = vld [vmem:[%s0 + $0x108] sm:$0xff]
    %v70 = vld [vmem:[%s0 + $0x110] sm:$0xff]
    %v71 = vld [vmem:[%s0 + $0x118] sm:$0xff]
    %v72 = vld [vmem:[%s0 + $0x120] sm:$0xff]
    %v73 = vld [vmem:[%s0 + $0x128] sm:$0xff]
    %v74 = vld [vmem:[%s0 + $0x130] sm:$0xff]
    %v75 = vld [vmem:[%s0 + $0x138] sm:$0xff]
    %v76 = vld [vmem:[%s0 + $0x140] sm:$0xff]
    %v77 = vld [vmem:[%s0 + $0x148] sm:$0xff]
    %v78 = vld [vmem:[%s0 + $0x150] sm:$0xff]
    %v79 = vld [vmem:[%s0 + $0x158] sm:$0xff]
    %v80 = vld [vmem:[%s0 + $0x160] sm:$0xff]
    %v81 = vld [vmem:[%s0 + $0x168] sm:$0xff]
    %v82 = vld [vmem:[%s0 + $0x170] sm:$0xff]
    %v83 = vld [vmem:[%s0 + $0x178] sm:$0xff]
    %v84 = vld [vmem:[%s0 + $0x180] sm:$0xff]
    %v85 = vld [vmem:[%s0 + $0x188] sm:$0xff]
    %v86 = vld [vmem:[%s1] sm:$0xff]
    %v87 = vld [vmem:[%s1 + $0x8] sm:$0xff]
    %v88 = vld [vmem:[%s1 + $0x10] sm:$0xff]
    %v89 = vld [vmem:[%s1 + $0x18] sm:$0xff]
    %v90 = vld [vmem:[%s1 + $0x20] sm:$0xff]
    %v91 = vld [vmem:[%s1 + $0x28] sm:$0xff]
    %v92 = vld [vmem:[%s1 + $0x30] sm:$0xff]
    %v93 = vld [vmem:[%s1 + $0x38] sm:$0xff]
    %v94 = vld [vmem:[%s1 + $0x40] sm:$0xff]
    %v95 = vld [vmem:[%s1 + $0x48] sm:$0xff]
    %v96 = vld [vmem:[%s1 + $0x50] sm:$0xff]
    %v97 = vld [vmem:[%s1 + $0x58] sm:$0xff]
    %v98 = vld [vmem:[%s1 + $0x60] sm:$0xff]
    %v99 = vld [vmem:[%s1 + $0x68] sm:$0xff]
    %v100 = vld [vmem:[%s1 + $0x70] sm:$0xff]
    %v101 = vld [vmem:[%s1 + $0x78] sm:$0xff]
    %v102 = vld [vmem:[%s1 + $0x80] sm:$0xff]
    %v103 = vld [vmem:[%s1 + $0x88] sm:$0xff]
    %v104 = vld [vmem:[%s1 + $0x90] sm:$0xff]
    %v105 = vld [vmem:[%s1 + $0x98] sm:$0xff]
    %v106 = vld [vmem:[%s1 + $0xa0] sm:$0xff]
    %v107 = vld [vmem:[%s1 + $0xa8] sm:$0xff]
    %v108 = vld [vmem:[%s1 + $0xb0] sm:$0xff]
    %v109 = vld [vmem:[%s1 + $0xb8] sm:$0xff]
    %v110 = vld [vmem:[%s1 + $0xc0] sm:$0xff]
    %v111 = vld [vmem:[%s1 + $0xc8] sm:$0xff]
    %v112 = vld [vmem:[%s1 + $0xd0] sm:$0xff]
    %v113 = vld [vmem:[%s1 + $0xd8] sm:$0xff]
    %v114 = vld [vmem:[%s1 + $0xe0] sm:$0xff]
    %v115 = vld [vmem:[%s1 + $0xe8] sm:$0xff]
    %v116 = vld [vmem:[%s1 + $0xf0] sm:$0xff]
    %v117 = vld [vmem:[%s1 + $0xf8] sm:$0xff]
    %v118 = vld [vmem:[%s1 + $0x100] sm:$0xff]
    %v119 = vld [vmem:[%s1 + $0x108] sm:$0xff]
    %v120 = vld [vmem:[%s1 + $0x110] sm:$0xff]
    %v121 = vld [vmem:[%s1 + $0x118] sm:$0xff]
    %v122 = vld [vmem:[%s1 + $0x120] sm:$0xff]
    %v123 = vld [vmem:[%s1 + $0x128] sm:$0xff]
    %v124 = vld [vmem:[%s1 + $0x130] sm:$0xff]
    %v125 = vld [vmem:[%s1 + $0x138] sm:$0xff]
    %v126 = vld [vmem:[%s1 + $0x140] sm:$0xff]
    %v127 = vld [vmem:[%s1 + $0x148] sm:$0xff]
    %v128 = vld [vmem:[%s1 + $0x150] sm:$0xff]
    %v129 = vld [vmem:[%s1 + $0x158] sm:$0xff]
    %v130 = vld [vmem:[%s1 + $0x160] sm:$0xff]
    %v131 = vld [vmem:[%s1 + $0x168] sm:$0xff]
    %v132 = vld [vmem:[%s1 + $0x170] sm:$0xff]
    %v133 = vld [vmem:[%s1 + $0x178] sm:$0xff]
    %v134 = vld [vmem:[%s1 + $0x180] sm:$0xff]
    %v135 = vld [vmem:[%s1 + $0x188] sm:$0xff]
    %v136 = vadd.f32 %v36, %v86
    %v137 = vadd.f32 %v37, %v87
    %v138 = vadd.f32 %v38, %v88
    %v139 = vadd.f32 %v39, %v89
    %v140 = vadd.f32 %v40, %v90
    %v141 = vadd.f32 %v41, %v91
    %v142 = vadd.f32 %v42, %v92
    %v143 = vadd.f32 %v43, %v93
    %v144 = vadd.f32 %v44, %v94
    %v145 = vadd.f32 %v45, %v95
    %v146 = vadd.f32 %v46, %v96
    %v147 = vadd.f32 %v47, %v97
    %v148 = vadd.f32 %v48, %v98
    %v149 = vadd.f32 %v49, %v99
    %v150 = vadd.f32 %v50, %v100
    %v151 = vadd.f32 %v51, %v101
    %v152 = vadd.f32 %v52, %v102
    %v153 = vadd.f32 %v53, %v103
    %v154 = vadd.f32 %v54, %v104
    %v155 = vadd.f32 %v55, %v105
    %v156 = vadd.f32 %v56, %v106
    %v157 = vadd.f32 %v57, %v107
    %v158 = vadd.f32 %v58, %v108
    %v159 = vadd.f32 %v59, %v109
    %v160 = vadd.f32 %v60, %v110
    %v161 = vadd.f32 %v61, %v111
    %v162 = vadd.f32 %v62, %v112
    %v163 = vadd.f32 %v63, %v113
    %v164 = vadd.f32 %v64, %v114
    %v165 = vadd.f32 %v65, %v115
    %v166 = vadd.f32 %v66, %v116
    %v167 = vadd.f32 %v67, %v117
    %v168 = vadd.f32 %v68, %v118
    %v169 = vadd.f32 %v69, %v119
    %v170 = vadd.f32 %v70, %v120
    %v171 = vadd.f32 %v71, %v121
    %v172 = vadd.f32 %v72, %v122
    %v173 = vadd.f32 %v73, %v123
    %v174 = vadd.f32 %v74, %v124
    %v175 = vadd.f32 %v75, %v125
    %v176 = vadd.f32 %v76, %v126
    %v177 = vadd.f32 %v77, %v127
    %v178 = vadd.f32 %v78, %v128
    %v179 = vadd.f32 %v79, %v129
    %v180 = vadd.f32 %v80, %v130
    %v181 = vadd.f32 %v81, %v131
    %v182 = vadd.f32 %v82, %v132
    %v183 = vadd.f32 %v83, %v133
    %v184 = vadd.f32 %v84, %v134
    %v185 = vadd.f32 %v85, %v135
    %v186 = vmax.f32 %v136, 0.0
    %v187 = vmax.f32 %v137, 0.0
    %v188 = vmax.f32 %v138, 0.0
    %v189 = vmax.f32 %v139, 0.0
    %v190 = vmax.f32 %v140, 0.0
    %v191 = vmax.f32 %v141, 0.0
    %v192 = vmax.f32 %v142, 0.0
    %v193 = vmax.f32 %v143, 0.0
    %v194 = vmax.f32 %v144, 0.0
    %v195 = vmax.f32 %v145, 0.0
    %v196 = vmax.f32 %v146, 0.0
    %v197 = vmax.f32 %v147, 0.0
    %v198 = vmax.f32 %v148, 0.0
    %v199 = vmax.f32 %v149, 0.0
    %v200 = vmax.f32 %v150, 0.0
    %v201 = vmax.f32 %v151, 0.0
    %v202 = vmax.f32 %v152, 0.0
    %v203 = vmax.f32 %v153, 0.0
    %v204 = vmax.f32 %v154, 0.0
    %v205 = vmax.f32 %v155, 0.0
    %v206 = vmax.f32 %v156, 0.0
    %v207 = vmax.f32 %v157, 0.0
    %v208 = vmax.f32 %v158, 0.0
    %v209 = vmax.f32 %v159, 0.0
    %v210 = vmax.f32 %v160, 0.0
    %v211 = vmax.f32 %v161, 0.0
    %v212 = vmax.f32 %v162, 0.0
    %v213 = vmax.f32 %v163, 0.0
    %v214 = vmax.f32 %v164, 0.0
    %v215 = vmax.f32 %v165, 0.0
    %v216 = vmax.f32 %v166, 0.0
    %v217 = vmax.f32 %v167, 0.0
    %v218 = vmax.f32 %v168, 0.0
    %v219 = vmax.f32 %v169, 0.0
    %v220 = vmax.f32 %v170, 0.0
    %v221 = vmax.f32 %v171, 0.0
    %v222 = vmax.f32 %v172, 0.0
    %v223 = vmax.f32 %v173, 0.0
    %v224 = vmax.f32 %v174, 0.0
    %v225 = vmax.f32 %v175, 0.0
    %v226 = vmax.f32 %v176, 0.0
    %v227 = vmax.f32 %v177, 0.0
    %v228 = vmax.f32 %v178, 0.0
    %v229 = vmax.f32 %v179, 0.0
    %v230 = vmax.f32 %v180, 0.0
    %v231 = vmax.f32 %v181, 0.0
    %v232 = vmax.f32 %v182, 0.0
    %v233 = vmax.f32 %v183, 0.0
    %v234 = vmax.f32 %v184, 0.0
    %v235 = vmax.f32 %v185, 0.0
    %v236 = vld [vmem:[#allocation2] sm:$0xff]
    %v237 = vld [vmem:[#allocation2 + $0x8] sm:$0xff]
    %v238 = vld [vmem:[#allocation2 + $0x10] sm:$0xff]
    %v239 = vld [vmem:[#allocation2 + $0x18] sm:$0xff]
    %v240 = vld [vmem:[#allocation2 + $0x20] sm:$0xff]
    %v241 = vld [vmem:[#allocation2 + $0x28] sm:$0xff]
    %v242 = vld [vmem:[#allocation2 + $0x30] sm:$0xff]
    %v243 = vld [vmem:[#allocation2 + $0x38] sm:$0xff]
    %v244 = vld [vmem:[#allocation2 + $0x40] sm:$0xff]
    %v245 = vld [vmem:[#allocation2 + $0x48] sm:$0xff]
    %v246 = vld [vmem:[#allocation2 + $0x50] sm:$0xff]
    %v247 = vld [vmem:[#allocation2 + $0x58] sm:$0xff]
    %v248 = vld [vmem:[#allocation2 + $0x60] sm:$0xff]
    %v249 = vld [vmem:[#allocation2 + $0x68] sm:$0xff]
    %v250 = vld [vmem:[#allocation2 + $0x70] sm:$0xff]
    %v251 = vld [vmem:[#allocation2 + $0x78] sm:$0xff]
    %v252 = vld [vmem:[#allocation2 + $0x80] sm:$0xff]
    %v253 = vld [vmem:[#allocation2 + $0x88] sm:$0xff]
    %v254 = vld [vmem:[#allocation2 + $0x90] sm:$0xff]
    %v255 = vld [vmem:[#allocation2 + $0x98] sm:$0xff]
    %v256 = vld [vmem:[#allocation2 + $0xa0] sm:$0xff]
    %v257 = vld [vmem:[#allocation2 + $0xa8] sm:$0xff]
    %v258 = vld [vmem:[#allocation2 + $0xb0] sm:$0xff]
    %v259 = vld [vmem:[#allocation2 + $0xb8] sm:$0xff]
    %v260 = vld [vmem:[#allocation2 + $0xc0] sm:$0xff]
    %v261 = vld [vmem:[#allocation2 + $0xc8] sm:$0xff]
    %v262 = vld [vmem:[#allocation2 + $0xd0] sm:$0xff]
    %v263 = vld [vmem:[#allocation2 + $0xd8] sm:$0xff]
    %v264 = vld [vmem:[#allocation2 + $0xe0] sm:$0xff]
    %v265 = vld [vmem:[#allocation2 + $0xe8] sm:$0xff]
    %v266 = vld [vmem:[#allocation2 + $0xf0] sm:$0xff]
    %v267 = vld [vmem:[#allocation2 + $0xf8] sm:$0xff]
    %v268 = vld [vmem:[#allocation2 + $0x100] sm:$0xff]
    %v269 = vld [vmem:[#allocation2 + $0x108] sm:$0xff]
    %v270 = vld [vmem:[#allocation2 + $0x110] sm:$0xff]
    %v271 = vld [vmem:[#allocation2 + $0x118] sm:$0xff]
    %v272 = vld [vmem:[#allocation2 + $0x120] sm:$0xff]
    %v273 = vld [vmem:[#allocation2 + $0x128] sm:$0xff]
    %v274 = vld [vmem:[#allocation2 + $0x130] sm:$0xff]
    %v275 = vld [vmem:[#allocation2 + $0x138] sm:$0xff]
    %v276 = vld [vmem:[#allocation2 + $0x140] sm:$0xff]
    %v277 = vld [vmem:[#allocation2 + $0x148] sm:$0xff]
    %v278 = vld [vmem:[#allocation2 + $0x150] sm:$0xff]
    %v279 = vld [vmem:[#allocation2 + $0x158] sm:$0xff]
    %v280 = vld [vmem:[#allocation2 + $0x160] sm:$0xff]
    %v281 = vld [vmem:[#allocation2 + $0x168] sm:$0xff]
    %v282 = vld [vmem:[#allocation2 + $0x170] sm:$0xff]
    %v283 = vld [vmem:[#allocation2 + $0x178] sm:$0xff]
    %v284 = vld [vmem:[#allocation2 + $0x180] sm:$0xff]
    %v285 = vld [vmem:[#allocation2 + $0x188] sm:$0xff]
    %v286 = vld [vmem:[#allocation2 + $0x190] sm:$0xff]
    %v287 = vld [vmem:[#allocation2 + $0x198] sm:$0xff]
    %v288 = vld [vmem:[#allocation2 + $0x1a0] sm:$0xff]
    %v289 = vld [vmem:[#allocation2 + $0x1a8] sm:$0xff]
    %v290 = vld [vmem:[#allocation2 + $0x1b0] sm:$0xff]
    %v291 = vld [vmem:[#allocation2 + $0x1b8] sm:$0xff]
    %v292 = vld [vmem:[#allocation2 + $0x1c0] sm:$0xff]
    %v293 = vld [vmem:[#allocation2 + $0x1c8] sm:$0xff]
    %v294 = vld [vmem:[#allocation2 + $0x1d0] sm:$0xff]
    %v295 = vld [vmem:[#allocation2 + $0x1d8] sm:$0xff]
    %v296 = vld [vmem:[#allocation2 + $0x1e0] sm:$0xff]
    %v297 = vld [vmem:[#allocation2 + $0x1e8] sm:$0xff]
    %v298 = vld [vmem:[#allocation2 + $0x1f0] sm:$0xff]
    %v299 = vld [vmem:[#allocation2 + $0x1f8] sm:$0xff]
    %v300 = vld [vmem:[#allocation2 + $0x200] sm:$0xff]
    %v301 = vld [vmem:[#allocation2 + $0x208] sm:$0xff]
    %v302 = vld [vmem:[#allocation2 + $0x210] sm:$0xff]
    %v303 = vld [vmem:[#allocation2 + $0x218] sm:$0xff]
    %v304 = vld [vmem:[#allocation2 + $0x220] sm:$0xff]
    %v305 = vld [vmem:[#allocation2 + $0x228] sm:$0xff]
    %v306 = vld [vmem:[#allocation2 + $0x230] sm:$0xff]
    %v307 = vld [vmem:[#allocation2 + $0x238] sm:$0xff]
    %v308 = vld [vmem:[#allocation2 + $0x240] sm:$0xff]
    %v309 = vld [vmem:[#allocation2 + $0x248] sm:$0xff]
    %v310 = vld [vmem:[#allocation2 + $0x250] sm:$0xff]
    %v311 = vld [vmem:[#allocation2 + $0x258] sm:$0xff]
    %v312 = vld [vmem:[#allocation2 + $0x260] sm:$0xff]
    %v313 = vld [vmem:[#allocation2 + $0x268] sm:$0xff]
    %v314 = vld [vmem:[#allocation2 + $0x270] sm:$0xff]
    %v315 = vld [vmem:[#allocation2 + $0x278] sm:$0xff]
    %v316 = vld [vmem:[#allocation2 + $0x280] sm:$0xff]
    %v317 = vld [vmem:[#allocation2 + $0x288] sm:$0xff]
    %v318 = vld [vmem:[#allocation2 + $0x290] sm:$0xff]
    %v319 = vld [vmem:[#allocation2 + $0x298] sm:$0xff]
    %v320 = vld [vmem:[#allocation2 + $0x2a0] sm:$0xff]
    %v321 = vld [vmem:[#allocation2 + $0x2a8] sm:$0xff]
    %v322 = vld [vmem:[#allocation2 + $0x2b0] sm:$0xff]
    %v323 = vld [vmem:[#allocation2 + $0x2b8] sm:$0xff]
    %v324 = vld [vmem:[#allocation2 + $0x2c0] sm:$0xff]
    %v325 = vld [vmem:[#allocation2 + $0x2c8] sm:$0xff]
    %v326 = vld [vmem:[#allocation2 + $0x2d0] sm:$0xff]
    %v327 = vld [vmem:[#allocation2 + $0x2d8] sm:$0xff]
    %v328 = vld [vmem:[#allocation2 + $0x2e0] sm:$0xff]
    %v329 = vld [vmem:[#allocation2 + $0x2e8] sm:$0xff]
    %v330 = vld [vmem:[#allocation2 + $0x2f0] sm:$0xff]
    %v331 = vld [vmem:[#allocation2 + $0x2f8] sm:$0xff]
    %v332 = vld [vmem:[#allocation2 + $0x300] sm:$0xff]
    %v333 = vld [vmem:[#allocation2 + $0x308] sm:$0xff]
    %v334 = vld [vmem:[#allocation2 + $0x310] sm:$0xff]
    %v335 = vld [vmem:[#allocation2 + $0x318] sm:$0xff]
    %v336 = vld [vmem:[#allocation2 + $0x320] sm:$0xff]
    %v337 = vld [vmem:[#allocation2 + $0x328] sm:$0xff]
    %v338 = vld [vmem:[#allocation2 + $0x330] sm:$0xff]
    %v339 = vld [vmem:[#allocation2 + $0x338] sm:$0xff]
    %v340 = vld [vmem:[#allocation2 + $0x340] sm:$0xff]
    %v341 = vld [vmem:[#allocation2 + $0x348] sm:$0xff]
    %v342 = vld [vmem:[#allocation2 + $0x350] sm:$0xff]
    %v343 = vld [vmem:[#allocation2 + $0x358] sm:$0xff]
    %v344 = vld [vmem:[#allocation2 + $0x360] sm:$0xff]
    %v345 = vld [vmem:[#allocation2 + $0x368] sm:$0xff]
    %v346 = vld [vmem:[#allocation2 + $0x370] sm:$0xff]
    %v347 = vld [vmem:[#allocation2 + $0x378] sm:$0xff]
    %v348 = vld [vmem:[#allocation2 + $0x380] sm:$0xff]
    %v349 = vld [vmem:[#allocation2 + $0x388] sm:$0xff]
    %v350 = vld [vmem:[#allocation2 + $0x390] sm:$0xff]
    %v351 = vld [vmem:[#allocation2 + $0x398] sm:$0xff]
    %v352 = vld [vmem:[#allocation2 + $0x3a0] sm:$0xff]
    %v353 = vld [vmem:[#allocation2 + $0x3a8] sm:$0xff]
    %v354 = vld [vmem:[#allocation2 + $0x3b0] sm:$0xff]
    %v355 = vld [vmem:[#allocation2 + $0x3b8] sm:$0xff]
    %v356 = vld [vmem:[#allocation2 + $0x3c0] sm:$0xff]
    %v357 = vld [vmem:[#allocation2 + $0x3c8] sm:$0xff]
    %v358 = vld [vmem:[#allocation2 + $0x3d0] sm:$0xff]
    %v359 = vld [vmem:[#allocation2 + $0x3d8] sm:$0xff]
    %v360 = vld [vmem:[#allocation2 + $0x3e0] sm:$0xff]
    %v361 = vld [vmem:[#allocation2 + $0x3e8] sm:$0xff]
    %v362 = vld [vmem:[#allocation2 + $0x3f0] sm:$0xff]
    %v363 = vld [vmem:[#allocation2 + $0x3f8] sm:$0xff]
    %v364 = vld [vmem:[#allocation2 + $0x400] sm:$0xff]
    %v365 = vld [vmem:[#allocation2 + $0x408] sm:$0xff]
    %v366 = vld [vmem:[#allocation2 + $0x410] sm:$0xff]
    %v367 = vld [vmem:[#allocation2 + $0x418] sm:$0xff]
    %v368 = vld [vmem:[#allocation2 + $0x420] sm:$0xff]
    %v369 = vld [vmem:[#allocation2 + $0x428] sm:$0xff]
    %v370 = vld [vmem:[#allocation2 + $0x430] sm:$0xff]
    %v371 = vld [vmem:[#allocation2 + $0x438] sm:$0xff]
    %v372 = vld [vmem:[#allocation2 + $0x440] sm:$0xff]
    %v373 = vld [vmem:[#allocation2 + $0x448] sm:$0xff]
    %v374 = vld [vmem:[#allocation2 + $0x450] sm:$0xff]
    %v375 = vld [vmem:[#allocation2 + $0x458] sm:$0xff]
    %v376 = vld [vmem:[#allocation2 + $0x460] sm:$0xff]
    %v377 = vld [vmem:[#allocation2 + $0x468] sm:$0xff]
    %v378 = vld [vmem:[#allocation2 + $0x470] sm:$0xff]
    %v379 = vld [vmem:[#allocation2 + $0x478] sm:$0xff]
    %v380 = vld [vmem:[#allocation2 + $0x480] sm:$0xff]
    %v381 = vld [vmem:[#allocation2 + $0x488] sm:$0xff]
    %v382 = vld [vmem:[#allocation2 + $0x490] sm:$0xff]
    %v383 = vld [vmem:[#allocation2 + $0x498] sm:$0xff]
    %v384 = vld [vmem:[#allocation2 + $0x4a0] sm:$0xff]
    %v385 = vld [vmem:[#allocation2 + $0x4a8] sm:$0xff]
    %v386 = vld [vmem:[#allocation2 + $0x4b0] sm:$0xff]
    %v387 = vld [vmem:[#allocation2 + $0x4b8] sm:$0xff]
    %v388 = vld [vmem:[#allocation2 + $0x4c0] sm:$0xff]
    %v389 = vld [vmem:[#allocation2 + $0x4c8] sm:$0xff]
    %v390 = vld [vmem:[#allocation2 + $0x4d0] sm:$0xff]
    %v391 = vld [vmem:[#allocation2 + $0x4d8] sm:$0xff]
    %v392 = vld [vmem:[#allocation2 + $0x4e0] sm:$0xff]
    %v393 = vld [vmem:[#allocation2 + $0x4e8] sm:$0xff]
    %v394 = vld [vmem:[#allocation2 + $0x4f0] sm:$0xff]
    %v395 = vld [vmem:[#allocation2 + $0x4f8] sm:$0xff]
    %v396 = vld [vmem:[#allocation2 + $0x500] sm:$0xff]
    %v397 = vld [vmem:[#allocation2 + $0x508] sm:$0xff]
    %v398 = vld [vmem:[#allocation2 + $0x510] sm:$0xff]
    %v399 = vld [vmem:[#allocation2 + $0x518] sm:$0xff]
    %v400 = vld [vmem:[#allocation2 + $0x520] sm:$0xff]
    %v401 = vld [vmem:[#allocation2 + $0x528] sm:$0xff]
    %v402 = vld [vmem:[#allocation2 + $0x530] sm:$0xff]
    %v403 = vld [vmem:[#allocation2 + $0x538] sm:$0xff]
    %v404 = vld [vmem:[#allocation2 + $0x540] sm:$0xff]
    %v405 = vld [vmem:[#allocation2 + $0x548] sm:$0xff]
    %v406 = vld [vmem:[#allocation2 + $0x550] sm:$0xff]
    %v407 = vld [vmem:[#allocation2 + $0x558] sm:$0xff]
    %v408 = vld [vmem:[#allocation2 + $0x560] sm:$0xff]
    %v409 = vld [vmem:[#allocation2 + $0x568] sm:$0xff]
    %v410 = vld [vmem:[#allocation2 + $0x570] sm:$0xff]
    %v411 = vld [vmem:[#allocation2 + $0x578] sm:$0xff]
    %v412 = vld [vmem:[#allocation2 + $0x580] sm:$0xff]
    %v413 = vld [vmem:[#allocation2 + $0x588] sm:$0xff]
    %v414 = vld [vmem:[#allocation2 + $0x590] sm:$0xff]
    %v415 = vld [vmem:[#allocation2 + $0x598] sm:$0xff]
    %v416 = vld [vmem:[#allocation2 + $0x5a0] sm:$0xff]
    %v417 = vld [vmem:[#allocation2 + $0x5a8] sm:$0xff]
    %v418 = vld [vmem:[#allocation2 + $0x5b0] sm:$0xff]
    %v419 = vld [vmem:[#allocation2 + $0x5b8] sm:$0xff]
    %v420 = vld [vmem:[#allocation2 + $0x5c0] sm:$0xff]
    %v421 = vld [vmem:[#allocation2 + $0x5c8] sm:$0xff]
    %v422 = vld [vmem:[#allocation2 + $0x5d0] sm:$0xff]
    %v423 = vld [vmem:[#allocation2 + $0x5d8] sm:$0xff]
    %v424 = vld [vmem:[#allocation2 + $0x5e0] sm:$0xff]
    %v425 = vld [vmem:[#allocation2 + $0x5e8] sm:$0xff]
    %v426 = vld [vmem:[#allocation2 + $0x5f0] sm:$0xff]
    %v427 = vld [vmem:[#allocation2 + $0x5f8] sm:$0xff]
    %v428 = vld [vmem:[#allocation2 + $0x600] sm:$0xff]
    %v429 = vld [vmem:[#allocation2 + $0x608] sm:$0xff]
    %v430 = vld [vmem:[#allocation2 + $0x610] sm:$0xff]
    %v431 = vld [vmem:[#allocation2 + $0x618] sm:$0xff]
    %v432 = vld [vmem:[#allocation2 + $0x620] sm:$0xff]
    %v433 = vld [vmem:[#allocation2 + $0x628] sm:$0xff]
    %v434 = vld [vmem:[#allocation2 + $0x630] sm:$0xff]
    %v435 = vld [vmem:[#allocation2 + $0x638] sm:$0xff]
    %vm436 = vcmask 130048
    %v438 = vsel %vm436, %v239, 0
    %v441 = vsel %vm436, %v243, 0
    %v444 = vsel %vm436, %v247, 0
    %v447 = vsel %vm436, %v251, 0
    %v450 = vsel %vm436, %v255, 0
    %v453 = vsel %vm436, %v259, 0
    %v456 = vsel %vm436, %v263, 0
    %v459 = vsel %vm436, %v267, 0
    %v462 = vsel %vm436, %v271, 0
    %v465 = vsel %vm436, %v275, 0
    %v468 = vsel %vm436, %v279, 0
    %v471 = vsel %vm436, %v283, 0
    %v474 = vsel %vm436, %v287, 0
    %v477 = vsel %vm436, %v291, 0
    %v480 = vsel %vm436, %v295, 0
    %v483 = vsel %vm436, %v299, 0
    %v486 = vsel %vm436, %v303, 0
    %v489 = vsel %vm436, %v307, 0
    %v492 = vsel %vm436, %v311, 0
    %v495 = vsel %vm436, %v315, 0
    %v498 = vsel %vm436, %v319, 0
    %v501 = vsel %vm436, %v323, 0
    %v504 = vsel %vm436, %v327, 0
    %v507 = vsel %vm436, %v331, 0
    %v510 = vsel %vm436, %v335, 0
    %v513 = vsel %vm436, %v339, 0
    %v516 = vsel %vm436, %v343, 0
    %v519 = vsel %vm436, %v347, 0
    %v522 = vsel %vm436, %v351, 0
    %v525 = vsel %vm436, %v355, 0
    %v528 = vsel %vm436, %v359, 0
    %v531 = vsel %vm436, %v363, 0
    %v534 = vsel %vm436, %v367, 0
    %v537 = vsel %vm436, %v371, 0
    %v540 = vsel %vm436, %v375, 0
    %v543 = vsel %vm436, %v379, 0
    %v546 = vsel %vm436, %v383, 0
    %v549 = vsel %vm436, %v387, 0
    %v552 = vsel %vm436, %v391, 0
    %v555 = vsel %vm436, %v395, 0
    %v558 = vsel %vm436, %v399, 0
    %v561 = vsel %vm436, %v403, 0
    %v564 = vsel %vm436, %v407, 0
    %v567 = vsel %vm436, %v411, 0
    %v570 = vsel %vm436, %v415, 0
    %v573 = vsel %vm436, %v419, 0
    %v576 = vsel %vm436, %v423, 0
    %v579 = vsel %vm436, %v427, 0
    %v582 = vsel %vm436, %v431, 0
    %v585 = vsel %vm436, %v435, 0
    %587 = vmatpush.msra.mxu0 %v201
    %588 = vmatpush.msra.mxu0 %v200
    %589 = vmatpush.msra.mxu0 %v199
    %590 = vmatpush.msra.mxu0 %v198
    %591 = vmatpush.msra.mxu0 %v197
    %592 = vmatpush.msra.mxu0 %v196
    %593 = vmatpush.msra.mxu0 %v195
    %594 = vmatpush.msra.mxu0 %v194
    %595 = vmatpush.msra.mxu0 %v193
    %596 = vmatpush.msra.mxu0 %v192
    %597 = vmatpush.msra.mxu0 %v191
    %598 = vmatpush.msra.mxu0 %v190
    %599 = vmatpush.msra.mxu0 %v189
    %600 = vmatpush.msra.mxu0 %v188
    %601 = vmatpush.msra.mxu0 %v187
    %602 = vmatpush.msra.mxu0 %v186
    %603 = vmatmul.f32.gmra.mxu0 %v236
    %v604 = vpop.f32.mrf.mxu0
    %v605 = vadd.f32 0.0, %v604
    %606 = vmatmul.f32.gmra.mxu0 %v240
    %v607 = vpop.f32.mrf.mxu0
    %v608 = vadd.f32 0.0, %v607
    %609 = vmatmul.f32.gmra.mxu0 %v244
    %v610 = vpop.f32.mrf.mxu0
    %v611 = vadd.f32 0.0, %v610
    %612 = vmatmul.f32.gmra.mxu0 %v248
    %v613 = vpop.f32.mrf.mxu0
    %v614 = vadd.f32 0.0, %v613
    %615 = vmatmul.f32.gmra.mxu0 %v252
    %v616 = vpop.f32.mrf.mxu0
    %v617 = vadd.f32 0.0, %v616
    %618 = vmatmul.f32.gmra.mxu0 %v256
    %v619 = vpop.f32.mrf.mxu0
    %v620 = vadd.f32 0.0, %v619
    %621 = vmatmul.f32.gmra.mxu0 %v260
    %v622 = vpop.f32.mrf.mxu0
    %v623 = vadd.f32 0.0, %v622
    %624 = vmatmul.f32.gmra.mxu0 %v264
    %v625 = vpop.f32.mrf.mxu0
    %v626 = vadd.f32 0.0, %v625
    %627 = vmatmul.f32.gmra.mxu0 %v268
    %v628 = vpop.f32.mrf.mxu0
    %v629 = vadd.f32 0.0, %v628
    %630 = vmatmul.f32.gmra.mxu0 %v272
    %v631 = vpop.f32.mrf.mxu0
    %v632 = vadd.f32 0.0, %v631
    %633 = vmatmul.f32.gmra.mxu0 %v276
    %v634 = vpop.f32.mrf.mxu0
    %v635 = vadd.f32 0.0, %v634
    %636 = vmatmul.f32.gmra.mxu0 %v280
    %v637 = vpop.f32.mrf.mxu0
    %v638 = vadd.f32 0.0, %v637
    %639 = vmatmul.f32.gmra.mxu0 %v284
    %v640 = vpop.f32.mrf.mxu0
    %v641 = vadd.f32 0.0, %v640
    %642 = vmatmul.f32.gmra.mxu0 %v288
    %v643 = vpop.f32.mrf.mxu0
    %v644 = vadd.f32 0.0, %v643
    %645 = vmatmul.f32.gmra.mxu0 %v292
    %v646 = vpop.f32.mrf.mxu0
    %v647 = vadd.f32 0.0, %v646
    %648 = vmatmul.f32.gmra.mxu0 %v296
    %v649 = vpop.f32.mrf.mxu0
    %v650 = vadd.f32 0.0, %v649
    %651 = vmatmul.f32.gmra.mxu0 %v300
    %v652 = vpop.f32.mrf.mxu0
    %v653 = vadd.f32 0.0, %v652
    %654 = vmatmul.f32.gmra.mxu0 %v304
    %v655 = vpop.f32.mrf.mxu0
    %v656 = vadd.f32 0.0, %v655
    %657 = vmatmul.f32.gmra.mxu0 %v308
    %v658 = vpop.f32.mrf.mxu0
    %v659 = vadd.f32 0.0, %v658
    %660 = vmatmul.f32.gmra.mxu0 %v312
    %v661 = vpop.f32.mrf.mxu0
    %v662 = vadd.f32 0.0, %v661
    %663 = vmatmul.f32.gmra.mxu0 %v316
    %v664 = vpop.f32.mrf.mxu0
    %v665 = vadd.f32 0.0, %v664
    %666 = vmatmul.f32.gmra.mxu0 %v320
    %v667 = vpop.f32.mrf.mxu0
    %v668 = vadd.f32 0.0, %v667
    %669 = vmatmul.f32.gmra.mxu0 %v324
    %v670 = vpop.f32.mrf.mxu0
    %v671 = vadd.f32 0.0, %v670
    %672 = vmatmul.f32.gmra.mxu0 %v328
    %v673 = vpop.f32.mrf.mxu0
    %v674 = vadd.f32 0.0, %v673
    %675 = vmatmul.f32.gmra.mxu0 %v332
    %v676 = vpop.f32.mrf.mxu0
    %v677 = vadd.f32 0.0, %v676
    %678 = vmatmul.f32.gmra.mxu0 %v336
    %v679 = vpop.f32.mrf.mxu0
    %v680 = vadd.f32 0.0, %v679
    %681 = vmatmul.f32.gmra.mxu0 %v340
    %v682 = vpop.f32.mrf.mxu0
    %v683 = vadd.f32 0.0, %v682
    %684 = vmatmul.f32.gmra.mxu0 %v344
    %v685 = vpop.f32.mrf.mxu0
    %v686 = vadd.f32 0.0, %v685
    %687 = vmatmul.f32.gmra.mxu0 %v348
    %v688 = vpop.f32.mrf.mxu0
    %v689 = vadd.f32 0.0, %v688
    %690 = vmatmul.f32.gmra.mxu0 %v352
    %v691 = vpop.f32.mrf.mxu0
    %v692 = vadd.f32 0.0, %v691
    %693 = vmatmul.f32.gmra.mxu0 %v356
    %v694 = vpop.f32.mrf.mxu0
    %v695 = vadd.f32 0.0, %v694
    %696 = vmatmul.f32.gmra.mxu0 %v360
    %v697 = vpop.f32.mrf.mxu0
    %v698 = vadd.f32 0.0, %v697
    %699 = vmatmul.f32.gmra.mxu0 %v364
    %v700 = vpop.f32.mrf.mxu0
    %v701 = vadd.f32 0.0, %v700
    %702 = vmatmul.f32.gmra.mxu0 %v368
    %v703 = vpop.f32.mrf.mxu0
    %v704 = vadd.f32 0.0, %v703
    %705 = vmatmul.f32.gmra.mxu0 %v372
    %v706 = vpop.f32.mrf.mxu0
    %v707 = vadd.f32 0.0, %v706
    %708 = vmatmul.f32.gmra.mxu0 %v376
    %v709 = vpop.f32.mrf.mxu0
    %v710 = vadd.f32 0.0, %v709
    %711 = vmatmul.f32.gmra.mxu0 %v380
    %v712 = vpop.f32.mrf.mxu0
    %v713 = vadd.f32 0.0, %v712
    %714 = vmatmul.f32.gmra.mxu0 %v384
    %v715 = vpop.f32.mrf.mxu0
    %v716 = vadd.f32 0.0, %v715
    %717 = vmatmul.f32.gmra.mxu0 %v388
    %v718 = vpop.f32.mrf.mxu0
    %v719 = vadd.f32 0.0, %v718
    %720 = vmatmul.f32.gmra.mxu0 %v392
    %v721 = vpop.f32.mrf.mxu0
    %v722 = vadd.f32 0.0, %v721
    %723 = vmatmul.f32.gmra.mxu0 %v396
    %v724 = vpop.f32.mrf.mxu0
    %v725 = vadd.f32 0.0, %v724
    %726 = vmatmul.f32.gmra.mxu0 %v400
    %v727 = vpop.f32.mrf.mxu0
    %v728 = vadd.f32 0.0, %v727
    %729 = vmatmul.f32.gmra.mxu0 %v404
    %v730 = vpop.f32.mrf.mxu0
    %v731 = vadd.f32 0.0, %v730
    %732 = vmatmul.f32.gmra.mxu0 %v408
    %v733 = vpop.f32.mrf.mxu0
    %v734 = vadd.f32 0.0, %v733
    %735 = vmatmul.f32.gmra.mxu0 %v412
    %v736 = vpop.f32.mrf.mxu0
    %v737 = vadd.f32 0.0, %v736
    %738 = vmatmul.f32.gmra.mxu0 %v416
    %v739 = vpop.f32.mrf.mxu0
    %v740 = vadd.f32 0.0, %v739
    %741 = vmatmul.f32.gmra.mxu0 %v420
    %v742 = vpop.f32.mrf.mxu0
    %v743 = vadd.f32 0.0, %v742
    %744 = vmatmul.f32.gmra.mxu0 %v424
    %v745 = vpop.f32.mrf.mxu0
    %v746 = vadd.f32 0.0, %v745
    %747 = vmatmul.f32.gmra.mxu0 %v428
    %v748 = vpop.f32.mrf.mxu0
    %v749 = vadd.f32 0.0, %v748
    %750 = vmatmul.f32.gmra.mxu0 %v432
    %v751 = vpop.f32.mrf.mxu0
    %v752 = vadd.f32 0.0, %v751
    %753 = vdwg.mxu0
    %754 = vmatpush.msra.mxu0 %v217
    %755 = vmatpush.msra.mxu0 %v216
    %756 = vmatpush.msra.mxu0 %v215
    %757 = vmatpush.msra.mxu0 %v214
    %758 = vmatpush.msra.mxu0 %v213
    %759 = vmatpush.msra.mxu0 %v212
    %760 = vmatpush.msra.mxu0 %v211
    %761 = vmatpush.msra.mxu0 %v210
    %762 = vmatpush.msra.mxu0 %v209
    %763 = vmatpush.msra.mxu0 %v208
    %764 = vmatpush.msra.mxu0 %v207
    %765 = vmatpush.msra.mxu0 %v206
    %766 = vmatpush.msra.mxu0 %v205
    %767 = vmatpush.msra.mxu0 %v204
    %768 = vmatpush.msra.mxu0 %v203
    %769 = vmatpush.msra.mxu0 %v202
    %770 = vmatmul.f32.gmra.mxu0 %v237
    %v771 = vpop.f32.mrf.mxu0
    %v772 = vadd.f32 %v605, %v771
    %773 = vmatmul.f32.gmra.mxu0 %v241
    %v774 = vpop.f32.mrf.mxu0
    %v775 = vadd.f32 %v608, %v774
    %776 = vmatmul.f32.gmra.mxu0 %v245
    %v777 = vpop.f32.mrf.mxu0
    %v778 = vadd.f32 %v611, %v777
    %779 = vmatmul.f32.gmra.mxu0 %v249
    %v780 = vpop.f32.mrf.mxu0
    %v781 = vadd.f32 %v614, %v780
    %782 = vmatmul.f32.gmra.mxu0 %v253
    %v783 = vpop.f32.mrf.mxu0
    %v784 = vadd.f32 %v617, %v783
    %785 = vmatmul.f32.gmra.mxu0 %v257
    %v786 = vpop.f32.mrf.mxu0
    %v787 = vadd.f32 %v620, %v786
    %788 = vmatmul.f32.gmra.mxu0 %v261
    %v789 = vpop.f32.mrf.mxu0
    %v790 = vadd.f32 %v623, %v789
    %791 = vmatmul.f32.gmra.mxu0 %v265
    %v792 = vpop.f32.mrf.mxu0
    %v793 = vadd.f32 %v626, %v792
    %794 = vmatmul.f32.gmra.mxu0 %v269
    %v795 = vpop.f32.mrf.mxu0
    %v796 = vadd.f32 %v629, %v795
    %797 = vmatmul.f32.gmra.mxu0 %v273
    %v798 = vpop.f32.mrf.mxu0
    %v799 = vadd.f32 %v632, %v798
    %800 = vmatmul.f32.gmra.mxu0 %v277
    %v801 = vpop.f32.mrf.mxu0
    %v802 = vadd.f32 %v635, %v801
    %803 = vmatmul.f32.gmra.mxu0 %v281
    %v804 = vpop.f32.mrf.mxu0
    %v805 = vadd.f32 %v638, %v804
    %806 = vmatmul.f32.gmra.mxu0 %v285
    %v807 = vpop.f32.mrf.mxu0
    %v808 = vadd.f32 %v641, %v807
    %809 = vmatmul.f32.gmra.mxu0 %v289
    %v810 = vpop.f32.mrf.mxu0
    %v811 = vadd.f32 %v644, %v810
    %812 = vmatmul.f32.gmra.mxu0 %v293
    %v813 = vpop.f32.mrf.mxu0
    %v814 = vadd.f32 %v647, %v813
    %815 = vmatmul.f32.gmra.mxu0 %v297
    %v816 = vpop.f32.mrf.mxu0
    %v817 = vadd.f32 %v650, %v816
    %818 = vmatmul.f32.gmra.mxu0 %v301
    %v819 = vpop.f32.mrf.mxu0
    %v820 = vadd.f32 %v653, %v819
    %821 = vmatmul.f32.gmra.mxu0 %v305
    %v822 = vpop.f32.mrf.mxu0
    %v823 = vadd.f32 %v656, %v822
    %824 = vmatmul.f32.gmra.mxu0 %v309
    %v825 = vpop.f32.mrf.mxu0
    %v826 = vadd.f32 %v659, %v825
    %827 = vmatmul.f32.gmra.mxu0 %v313
    %v828 = vpop.f32.mrf.mxu0
    %v829 = vadd.f32 %v662, %v828
    %830 = vmatmul.f32.gmra.mxu0 %v317
    %v831 = vpop.f32.mrf.mxu0
    %v832 = vadd.f32 %v665, %v831
    %833 = vmatmul.f32.gmra.mxu0 %v321
    %v834 = vpop.f32.mrf.mxu0
    %v835 = vadd.f32 %v668, %v834
    %836 = vmatmul.f32.gmra.mxu0 %v325
    %v837 = vpop.f32.mrf.mxu0
    %v838 = vadd.f32 %v671, %v837
    %839 = vmatmul.f32.gmra.mxu0 %v329
    %v840 = vpop.f32.mrf.mxu0
    %v841 = vadd.f32 %v674, %v840
    %842 = vmatmul.f32.gmra.mxu0 %v333
    %v843 = vpop.f32.mrf.mxu0
    %v844 = vadd.f32 %v677, %v843
    %845 = vmatmul.f32.gmra.mxu0 %v337
    %v846 = vpop.f32.mrf.mxu0
    %v847 = vadd.f32 %v680, %v846
    %848 = vmatmul.f32.gmra.mxu0 %v341
    %v849 = vpop.f32.mrf.mxu0
    %v850 = vadd.f32 %v683, %v849
    %851 = vmatmul.f32.gmra.mxu0 %v345
    %v852 = vpop.f32.mrf.mxu0
    %v853 = vadd.f32 %v686, %v852
    %854 = vmatmul.f32.gmra.mxu0 %v349
    %v855 = vpop.f32.mrf.mxu0
    %v856 = vadd.f32 %v689, %v855
    %857 = vmatmul.f32.gmra.mxu0 %v353
    %v858 = vpop.f32.mrf.mxu0
    %v859 = vadd.f32 %v692, %v858
    %860 = vmatmul.f32.gmra.mxu0 %v357
    %v861 = vpop.f32.mrf.mxu0
    %v862 = vadd.f32 %v695, %v861
    %863 = vmatmul.f32.gmra.mxu0 %v361
    %v864 = vpop.f32.mrf.mxu0
    %v865 = vadd.f32 %v698, %v864
    %866 = vmatmul.f32.gmra.mxu0 %v365
    %v867 = vpop.f32.mrf.mxu0
    %v868 = vadd.f32 %v701, %v867
    %869 = vmatmul.f32.gmra.mxu0 %v369
    %v870 = vpop.f32.mrf.mxu0
    %v871 = vadd.f32 %v704, %v870
    %872 = vmatmul.f32.gmra.mxu0 %v373
    %v873 = vpop.f32.mrf.mxu0
    %v874 = vadd.f32 %v707, %v873
    %875 = vmatmul.f32.gmra.mxu0 %v377
    %v876 = vpop.f32.mrf.mxu0
    %v877 = vadd.f32 %v710, %v876
    %878 = vmatmul.f32.gmra.mxu0 %v381
    %v879 = vpop.f32.mrf.mxu0
    %v880 = vadd.f32 %v713, %v879
    %881 = vmatmul.f32.gmra.mxu0 %v385
    %v882 = vpop.f32.mrf.mxu0
    %v883 = vadd.f32 %v716, %v882
    %884 = vmatmul.f32.gmra.mxu0 %v389
    %v885 = vpop.f32.mrf.mxu0
    %v886 = vadd.f32 %v719, %v885
    %887 = vmatmul.f32.gmra.mxu0 %v393
    %v888 = vpop.f32.mrf.mxu0
    %v889 = vadd.f32 %v722, %v888
    %890 = vmatmul.f32.gmra.mxu0 %v397
    %v891 = vpop.f32.mrf.mxu0
    %v892 = vadd.f32 %v725, %v891
    %893 = vmatmul.f32.gmra.mxu0 %v401
    %v894 = vpop.f32.mrf.mxu0
    %v895 = vadd.f32 %v728, %v894
    %896 = vmatmul.f32.gmra.mxu0 %v405
    %v897 = vpop.f32.mrf.mxu0
    %v898 = vadd.f32 %v731, %v897
    %899 = vmatmul.f32.gmra.mxu0 %v409
    %v900 = vpop.f32.mrf.mxu0
    %v901 = vadd.f32 %v734, %v900
    %902 = vmatmul.f32.gmra.mxu0 %v413
    %v903 = vpop.f32.mrf.mxu0
    %v904 = vadd.f32 %v737, %v903
    %905 = vmatmul.f32.gmra.mxu0 %v417
    %v906 = vpop.f32.mrf.mxu0
    %v907 = vadd.f32 %v740, %v906
    %908 = vmatmul.f32.gmra.mxu0 %v421
    %v909 = vpop.f32.mrf.mxu0
    %v910 = vadd.f32 %v743, %v909
    %911 = vmatmul.f32.gmra.mxu0 %v425
    %v912 = vpop.f32.mrf.mxu0
    %v913 = vadd.f32 %v746, %v912
    %914 = vmatmul.f32.gmra.mxu0 %v429
    %v915 = vpop.f32.mrf.mxu0
    %v916 = vadd.f32 %v749, %v915
    %917 = vmatmul.f32.gmra.mxu0 %v433
    %v918 = vpop.f32.mrf.mxu0
    %v919 = vadd.f32 %v752, %v918
    %920 = vdwg.mxu0
    %921 = vmatpush.msra.mxu0 %v233
    %922 = vmatpush.msra.mxu0 %v232
    %923 = vmatpush.msra.mxu0 %v231
    %924 = vmatpush.msra.mxu0 %v230
    %925 = vmatpush.msra.mxu0 %v229
    %926 = vmatpush.msra.mxu0 %v228
    %927 = vmatpush.msra.mxu0 %v227
    %928 = vmatpush.msra.mxu0 %v226
    %929 = vmatpush.msra.mxu0 %v225
    %930 = vmatpush.msra.mxu0 %v224
    %931 = vmatpush.msra.mxu0 %v223
    %932 = vmatpush.msra.mxu0 %v222
    %933 = vmatpush.msra.mxu0 %v221
    %934 = vmatpush.msra.mxu0 %v220
    %935 = vmatpush.msra.mxu0 %v219
    %936 = vmatpush.msra.mxu0 %v218
    %937 = vmatmul.f32.gmra.mxu0 %v238
    %v938 = vpop.f32.mrf.mxu0
    %v939 = vadd.f32 %v772, %v938
    %940 = vmatmul.f32.gmra.mxu0 %v242
    %v941 = vpop.f32.mrf.mxu0
    %v942 = vadd.f32 %v775, %v941
    %943 = vmatmul.f32.gmra.mxu0 %v246
    %v944 = vpop.f32.mrf.mxu0
    %v945 = vadd.f32 %v778, %v944
    %946 = vmatmul.f32.gmra.mxu0 %v250
    %v947 = vpop.f32.mrf.mxu0
    %v948 = vadd.f32 %v781, %v947
    %949 = vmatmul.f32.gmra.mxu0 %v254
    %v950 = vpop.f32.mrf.mxu0
    %v951 = vadd.f32 %v784, %v950
    %952 = vmatmul.f32.gmra.mxu0 %v258
    %v953 = vpop.f32.mrf.mxu0
    %v954 = vadd.f32 %v787, %v953
    %955 = vmatmul.f32.gmra.mxu0 %v262
    %v956 = vpop.f32.mrf.mxu0
    %v957 = vadd.f32 %v790, %v956
    %958 = vmatmul.f32.gmra.mxu0 %v266
    %v959 = vpop.f32.mrf.mxu0
    %v960 = vadd.f32 %v793, %v959
    %961 = vmatmul.f32.gmra.mxu0 %v270
    %v962 = vpop.f32.mrf.mxu0
    %v963 = vadd.f32 %v796, %v962
    %964 = vmatmul.f32.gmra.mxu0 %v274
    %v965 = vpop.f32.mrf.mxu0
    %v966 = vadd.f32 %v799, %v965
    %967 = vmatmul.f32.gmra.mxu0 %v278
    %v968 = vpop.f32.mrf.mxu0
    %v969 = vadd.f32 %v802, %v968
    %970 = vmatmul.f32.gmra.mxu0 %v282
    %v971 = vpop.f32.mrf.mxu0
    %v972 = vadd.f32 %v805, %v971
    %973 = vmatmul.f32.gmra.mxu0 %v286
    %v974 = vpop.f32.mrf.mxu0
    %v975 = vadd.f32 %v808, %v974
    %976 = vmatmul.f32.gmra.mxu0 %v290
    %v977 = vpop.f32.mrf.mxu0
    %v978 = vadd.f32 %v811, %v977
    %979 = vmatmul.f32.gmra.mxu0 %v294
    %v980 = vpop.f32.mrf.mxu0
    %v981 = vadd.f32 %v814, %v980
    %982 = vmatmul.f32.gmra.mxu0 %v298
    %v983 = vpop.f32.mrf.mxu0
    %v984 = vadd.f32 %v817, %v983
    %985 = vmatmul.f32.gmra.mxu0 %v302
    %v986 = vpop.f32.mrf.mxu0
    %v987 = vadd.f32 %v820, %v986
    %988 = vmatmul.f32.gmra.mxu0 %v306
    %v989 = vpop.f32.mrf.mxu0
    %v990 = vadd.f32 %v823, %v989
    %991 = vmatmul.f32.gmra.mxu0 %v310
    %v992 = vpop.f32.mrf.mxu0
    %v993 = vadd.f32 %v826, %v992
    %994 = vmatmul.f32.gmra.mxu0 %v314
    %v995 = vpop.f32.mrf.mxu0
    %v996 = vadd.f32 %v829, %v995
    %997 = vmatmul.f32.gmra.mxu0 %v318
    %v998 = vpop.f32.mrf.mxu0
    %v999 = vadd.f32 %v832, %v998
    %1000 = vmatmul.f32.gmra.mxu0 %v322
    %v1001 = vpop.f32.mrf.mxu0
    %v1002 = vadd.f32 %v835, %v1001
    %1003 = vmatmul.f32.gmra.mxu0 %v326
    %v1004 = vpop.f32.mrf.mxu0
    %v1005 = vadd.f32 %v838, %v1004
    %1006 = vmatmul.f32.gmra.mxu0 %v330
    %v1007 = vpop.f32.mrf.mxu0
    %v1008 = vadd.f32 %v841, %v1007
    %1009 = vmatmul.f32.gmra.mxu0 %v334
    %v1010 = vpop.f32.mrf.mxu0
    %v1011 = vadd.f32 %v844, %v1010
    %1012 = vmatmul.f32.gmra.mxu0 %v338
    %v1013 = vpop.f32.mrf.mxu0
    %v1014 = vadd.f32 %v847, %v1013
    %1015 = vmatmul.f32.gmra.mxu0 %v342
    %v1016 = vpop.f32.mrf.mxu0
    %v1017 = vadd.f32 %v850, %v1016
    %1018 = vmatmul.f32.gmra.mxu0 %v346
    %v1019 = vpop.f32.mrf.mxu0
    %v1020 = vadd.f32 %v853, %v1019
    %1021 = vmatmul.f32.gmra.mxu0 %v350
    %v1022 = vpop.f32.mrf.mxu0
    %v1023 = vadd.f32 %v856, %v1022
    %1024 = vmatmul.f32.gmra.mxu0 %v354
    %v1025 = vpop.f32.mrf.mxu0
    %v1026 = vadd.f32 %v859, %v1025
    %1027 = vmatmul.f32.gmra.mxu0 %v358
    %v1028 = vpop.f32.mrf.mxu0
    %v1029 = vadd.f32 %v862, %v1028
    %1030 = vmatmul.f32.gmra.mxu0 %v362
    %v1031 = vpop.f32.mrf.mxu0
    %v1032 = vadd.f32 %v865, %v1031
    %1033 = vmatmul.f32.gmra.mxu0 %v366
    %v1034 = vpop.f32.mrf.mxu0
    %v1035 = vadd.f32 %v868, %v1034
    %1036 = vmatmul.f32.gmra.mxu0 %v370
    %v1037 = vpop.f32.mrf.mxu0
    %v1038 = vadd.f32 %v871, %v1037
    %1039 = vmatmul.f32.gmra.mxu0 %v374
    %v1040 = vpop.f32.mrf.mxu0
    %v1041 = vadd.f32 %v874, %v1040
    %1042 = vmatmul.f32.gmra.mxu0 %v378
    %v1043 = vpop.f32.mrf.mxu0
    %v1044 = vadd.f32 %v877, %v1043
    %1045 = vmatmul.f32.gmra.mxu0 %v382
    %v1046 = vpop.f32.mrf.mxu0
    %v1047 = vadd.f32 %v880, %v1046
    %1048 = vmatmul.f32.gmra.mxu0 %v386
    %v1049 = vpop.f32.mrf.mxu0
    %v1050 = vadd.f32 %v883, %v1049
    %1051 = vmatmul.f32.gmra.mxu0 %v390
    %v1052 = vpop.f32.mrf.mxu0
    %v1053 = vadd.f32 %v886, %v1052
    %1054 = vmatmul.f32.gmra.mxu0 %v394
    %v1055 = vpop.f32.mrf.mxu0
    %v1056 = vadd.f32 %v889, %v1055
    %1057 = vmatmul.f32.gmra.mxu0 %v398
    %v1058 = vpop.f32.mrf.mxu0
    %v1059 = vadd.f32 %v892, %v1058
    %1060 = vmatmul.f32.gmra.mxu0 %v402
    %v1061 = vpop.f32.mrf.mxu0
    %v1062 = vadd.f32 %v895, %v1061
    %1063 = vmatmul.f32.gmra.mxu0 %v406
    %v1064 = vpop.f32.mrf.mxu0
    %v1065 = vadd.f32 %v898, %v1064
    %1066 = vmatmul.f32.gmra.mxu0 %v410
    %v1067 = vpop.f32.mrf.mxu0
    %v1068 = vadd.f32 %v901, %v1067
    %1069 = vmatmul.f32.gmra.mxu0 %v414
    %v1070 = vpop.f32.mrf.mxu0
    %v1071 = vadd.f32 %v904, %v1070
    %1072 = vmatmul.f32.gmra.mxu0 %v418
    %v1073 = vpop.f32.mrf.mxu0
    %v1074 = vadd.f32 %v907, %v1073
    %1075 = vmatmul.f32.gmra.mxu0 %v422
    %v1076 = vpop.f32.mrf.mxu0
    %v1077 = vadd.f32 %v910, %v1076
    %1078 = vmatmul.f32.gmra.mxu0 %v426
    %v1079 = vpop.f32.mrf.mxu0
    %v1080 = vadd.f32 %v913, %v1079
    %1081 = vmatmul.f32.gmra.mxu0 %v430
    %v1082 = vpop.f32.mrf.mxu0
    %v1083 = vadd.f32 %v916, %v1082
    %1084 = vmatmul.f32.gmra.mxu0 %v434
    %v1085 = vpop.f32.mrf.mxu0
    %v1086 = vadd.f32 %v919, %v1085
    %1087 = vdwg.mxu0
    %1088 = vmatpush.msra.mxu0 0.0
    %1089 = vmatpush.msra.mxu0 0.0
    %1090 = vmatpush.msra.mxu0 0.0
    %1091 = vmatpush.msra.mxu0 0.0
    %1092 = vmatpush.msra.mxu0 0.0
    %1093 = vmatpush.msra.mxu0 0.0
    %1094 = vmatpush.msra.mxu0 0.0
    %1095 = vmatpush.msra.mxu0 0.0
    %1096 = vmatpush.msra.mxu0 0.0
    %1097 = vmatpush.msra.mxu0 0.0
    %1098 = vmatpush.msra.mxu0 0.0
    %1099 = vmatpush.msra.mxu0 0.0
    %1100 = vmatpush.msra.mxu0 0.0
    %1101 = vmatpush.msra.mxu0 0.0
    %1102 = vmatpush.msra.mxu0 %v235
    %1103 = vmatpush.msra.mxu0 %v234
    %1104 = vmatmul.f32.gmra.mxu0 %v438
    %v1105 = vpop.f32.mrf.mxu0
    %v1106 = vadd.f32 %v939, %v1105
    %1107 = vmatmul.f32.gmra.mxu0 %v441
    %v1108 = vpop.f32.mrf.mxu0
    %v1109 = vadd.f32 %v942, %v1108
    %1110 = vmatmul.f32.gmra.mxu0 %v444
    %v1111 = vpop.f32.mrf.mxu0
    %v1112 = vadd.f32 %v945, %v1111
    %1113 = vmatmul.f32.gmra.mxu0 %v447
    %v1114 = vpop.f32.mrf.mxu0
    %v1115 = vadd.f32 %v948, %v1114
    %1116 = vmatmul.f32.gmra.mxu0 %v450
    %v1117 = vpop.f32.mrf.mxu0
    %v1118 = vadd.f32 %v951, %v1117
    %1119 = vmatmul.f32.gmra.mxu0 %v453
    %v1120 = vpop.f32.mrf.mxu0
    %v1121 = vadd.f32 %v954, %v1120
    %1122 = vmatmul.f32.gmra.mxu0 %v456
    %v1123 = vpop.f32.mrf.mxu0
    %v1124 = vadd.f32 %v957, %v1123
    %1125 = vmatmul.f32.gmra.mxu0 %v459
    %v1126 = vpop.f32.mrf.mxu0
    %v1127 = vadd.f32 %v960, %v1126
    %1128 = vmatmul.f32.gmra.mxu0 %v462
    %v1129 = vpop.f32.mrf.mxu0
    %v1130 = vadd.f32 %v963, %v1129
    %1131 = vmatmul.f32.gmra.mxu0 %v465
    %v1132 = vpop.f32.mrf.mxu0
    %v1133 = vadd.f32 %v966, %v1132
    %1134 = vmatmul.f32.gmra.mxu0 %v468
    %v1135 = vpop.f32.mrf.mxu0
    %v1136 = vadd.f32 %v969, %v1135
    %1137 = vmatmul.f32.gmra.mxu0 %v471
    %v1138 = vpop.f32.mrf.mxu0
    %v1139 = vadd.f32 %v972, %v1138
    %1140 = vmatmul.f32.gmra.mxu0 %v474
    %v1141 = vpop.f32.mrf.mxu0
    %v1142 = vadd.f32 %v975, %v1141
    %1143 = vmatmul.f32.gmra.mxu0 %v477
    %v1144 = vpop.f32.mrf.mxu0
    %v1145 = vadd.f32 %v978, %v1144
    %1146 = vmatmul.f32.gmra.mxu0 %v480
    %v1147 = vpop.f32.mrf.mxu0
    %v1148 = vadd.f32 %v981, %v1147
    %1149 = vmatmul.f32.gmra.mxu0 %v483
    %v1150 = vpop.f32.mrf.mxu0
    %v1151 = vadd.f32 %v984, %v1150
    %1152 = vmatmul.f32.gmra.mxu0 %v486
    %v1153 = vpop.f32.mrf.mxu0
    %v1154 = vadd.f32 %v987, %v1153
    %1155 = vmatmul.f32.gmra.mxu0 %v489
    %v1156 = vpop.f32.mrf.mxu0
    %v1157 = vadd.f32 %v990, %v1156
    %1158 = vmatmul.f32.gmra.mxu0 %v492
    %v1159 = vpop.f32.mrf.mxu0
    %v1160 = vadd.f32 %v993, %v1159
    %1161 = vmatmul.f32.gmra.mxu0 %v495
    %v1162 = vpop.f32.mrf.mxu0
    %v1163 = vadd.f32 %v996, %v1162
    %1164 = vmatmul.f32.gmra.mxu0 %v498
    %v1165 = vpop.f32.mrf.mxu0
    %v1166 = vadd.f32 %v999, %v1165
    %1167 = vmatmul.f32.gmra.mxu0 %v501
    %v1168 = vpop.f32.mrf.mxu0
    %v1169 = vadd.f32 %v1002, %v1168
    %1170 = vmatmul.f32.gmra.mxu0 %v504
    %v1171 = vpop.f32.mrf.mxu0
    %v1172 = vadd.f32 %v1005, %v1171
    %1173 = vmatmul.f32.gmra.mxu0 %v507
    %v1174 = vpop.f32.mrf.mxu0
    %v1175 = vadd.f32 %v1008, %v1174
    %1176 = vmatmul.f32.gmra.mxu0 %v510
    %v1177 = vpop.f32.mrf.mxu0
    %v1178 = vadd.f32 %v1011, %v1177
    %1179 = vmatmul.f32.gmra.mxu0 %v513
    %v1180 = vpop.f32.mrf.mxu0
    %v1181 = vadd.f32 %v1014, %v1180
    %1182 = vmatmul.f32.gmra.mxu0 %v516
    %v1183 = vpop.f32.mrf.mxu0
    %v1184 = vadd.f32 %v1017, %v1183
    %1185 = vmatmul.f32.gmra.mxu0 %v519
    %v1186 = vpop.f32.mrf.mxu0
    %v1187 = vadd.f32 %v1020, %v1186
    %1188 = vmatmul.f32.gmra.mxu0 %v522
    %v1189 = vpop.f32.mrf.mxu0
    %v1190 = vadd.f32 %v1023, %v1189
    %1191 = vmatmul.f32.gmra.mxu0 %v525
    %v1192 = vpop.f32.mrf.mxu0
    %v1193 = vadd.f32 %v1026, %v1192
    %1194 = vmatmul.f32.gmra.mxu0 %v528
    %v1195 = vpop.f32.mrf.mxu0
    %v1196 = vadd.f32 %v1029, %v1195
    %1197 = vmatmul.f32.gmra.mxu0 %v531
    %v1198 = vpop.f32.mrf.mxu0
    %v1199 = vadd.f32 %v1032, %v1198
    %1200 = vmatmul.f32.gmra.mxu0 %v534
    %v1201 = vpop.f32.mrf.mxu0
    %v1202 = vadd.f32 %v1035, %v1201
    %1203 = vmatmul.f32.gmra.mxu0 %v537
    %v1204 = vpop.f32.mrf.mxu0
    %v1205 = vadd.f32 %v1038, %v1204
    %1206 = vmatmul.f32.gmra.mxu0 %v540
    %v1207 = vpop.f32.mrf.mxu0
    %v1208 = vadd.f32 %v1041, %v1207
    %1209 = vmatmul.f32.gmra.mxu0 %v543
    %v1210 = vpop.f32.mrf.mxu0
    %v1211 = vadd.f32 %v1044, %v1210
    %1212 = vmatmul.f32.gmra.mxu0 %v546
    %v1213 = vpop.f32.mrf.mxu0
    %v1214 = vadd.f32 %v1047, %v1213
    %1215 = vmatmul.f32.gmra.mxu0 %v549
    %v1216 = vpop.f32.mrf.mxu0
    %v1217 = vadd.f32 %v1050, %v1216
    %1218 = vmatmul.f32.gmra.mxu0 %v552
    %v1219 = vpop.f32.mrf.mxu0
    %v1220 = vadd.f32 %v1053, %v1219
    %1221 = vmatmul.f32.gmra.mxu0 %v555
    %v1222 = vpop.f32.mrf.mxu0
    %v1223 = vadd.f32 %v1056, %v1222
    %1224 = vmatmul.f32.gmra.mxu0 %v558
    %v1225 = vpop.f32.mrf.mxu0
    %v1226 = vadd.f32 %v1059, %v1225
    %1227 = vmatmul.f32.gmra.mxu0 %v561
    %v1228 = vpop.f32.mrf.mxu0
    %v1229 = vadd.f32 %v1062, %v1228
    %1230 = vmatmul.f32.gmra.mxu0 %v564
    %v1231 = vpop.f32.mrf.mxu0
    %v1232 = vadd.f32 %v1065, %v1231
    %1233 = vmatmul.f32.gmra.mxu0 %v567
    %v1234 = vpop.f32.mrf.mxu0
    %v1235 = vadd.f32 %v1068, %v1234
    %1236 = vmatmul.f32.gmra.mxu0 %v570
    %v1237 = vpop.f32.mrf.mxu0
    %v1238 = vadd.f32 %v1071, %v1237
    %1239 = vmatmul.f32.gmra.mxu0 %v573
    %v1240 = vpop.f32.mrf.mxu0
    %v1241 = vadd.f32 %v1074, %v1240
    %1242 = vmatmul.f32.gmra.mxu0 %v576
    %v1243 = vpop.f32.mrf.mxu0
    %v1244 = vadd.f32 %v1077, %v1243
    %1245 = vmatmul.f32.gmra.mxu0 %v579
    %v1246 = vpop.f32.mrf.mxu0
    %v1247 = vadd.f32 %v1080, %v1246
    %1248 = vmatmul.f32.gmra.mxu0 %v582
    %v1249 = vpop.f32.mrf.mxu0
    %v1250 = vadd.f32 %v1083, %v1249
    %1251 = vmatmul.f32.gmra.mxu0 %v585
    %v1252 = vpop.f32.mrf.mxu0
    %v1253 = vadd.f32 %v1086, %v1252
    %1254 = vdwg.mxu0
    %vm1255 = vcmask 400384
    %v1256 = vsel %vm1255, %v1106, 0.0
    %1257 = vadd.xlane.f32.xlu0 %v1256
    %v1258 = vpop.xlane.xlu0 %1257
    %v1259 = vsel %vm1255, %v1109, 0.0
    %1260 = vadd.xlane.f32.xlu0 %v1259
    %v1261 = vpop.xlane.xlu0 %1260
    %v1262 = vsel %vm1255, %v1112, 0.0
    %1263 = vadd.xlane.f32.xlu0 %v1262
    %v1264 = vpop.xlane.xlu0 %1263
    %v1265 = vsel %vm1255, %v1115, 0.0
    %1266 = vadd.xlane.f32.xlu0 %v1265
    %v1267 = vpop.xlane.xlu0 %1266
    %v1268 = vsel %vm1255, %v1118, 0.0
    %1269 = vadd.xlane.f32.xlu0 %v1268
    %v1270 = vpop.xlane.xlu0 %1269
    %v1271 = vsel %vm1255, %v1121, 0.0
    %1272 = vadd.xlane.f32.xlu0 %v1271
    %v1273 = vpop.xlane.xlu0 %1272
    %v1274 = vsel %vm1255, %v1124, 0.0
    %1275 = vadd.xlane.f32.xlu0 %v1274
    %v1276 = vpop.xlane.xlu0 %1275
    %v1277 = vsel %vm1255, %v1127, 0.0
    %1278 = vadd.xlane.f32.xlu0 %v1277
    %v1279 = vpop.xlane.xlu0 %1278
    %v1280 = vsel %vm1255, %v1130, 0.0
    %1281 = vadd.xlane.f32.xlu0 %v1280
    %v1282 = vpop.xlane.xlu0 %1281
    %v1283 = vsel %vm1255, %v1133, 0.0
    %1284 = vadd.xlane.f32.xlu0 %v1283
    %v1285 = vpop.xlane.xlu0 %1284
    %v1286 = vsel %vm1255, %v1136, 0.0
    %1287 = vadd.xlane.f32.xlu0 %v1286
    %v1288 = vpop.xlane.xlu0 %1287
    %v1289 = vsel %vm1255, %v1139, 0.0
    %1290 = vadd.xlane.f32.xlu0 %v1289
    %v1291 = vpop.xlane.xlu0 %1290
    %v1292 = vsel %vm1255, %v1142, 0.0
    %1293 = vadd.xlane.f32.xlu0 %v1292
    %v1294 = vpop.xlane.xlu0 %1293
    %v1295 = vsel %vm1255, %v1145, 0.0
    %1296 = vadd.xlane.f32.xlu0 %v1295
    %v1297 = vpop.xlane.xlu0 %1296
    %v1298 = vsel %vm1255, %v1148, 0.0
    %1299 = vadd.xlane.f32.xlu0 %v1298
    %v1300 = vpop.xlane.xlu0 %1299
    %v1301 = vsel %vm1255, %v1151, 0.0
    %1302 = vadd.xlane.f32.xlu0 %v1301
    %v1303 = vpop.xlane.xlu0 %1302
    %v1304 = vsel %vm1255, %v1154, 0.0
    %1305 = vadd.xlane.f32.xlu0 %v1304
    %v1306 = vpop.xlane.xlu0 %1305
    %v1307 = vsel %vm1255, %v1157, 0.0
    %1308 = vadd.xlane.f32.xlu0 %v1307
    %v1309 = vpop.xlane.xlu0 %1308
    %v1310 = vsel %vm1255, %v1160, 0.0
    %1311 = vadd.xlane.f32.xlu0 %v1310
    %v1312 = vpop.xlane.xlu0 %1311
    %v1313 = vsel %vm1255, %v1163, 0.0
    %1314 = vadd.xlane.f32.xlu0 %v1313
    %v1315 = vpop.xlane.xlu0 %1314
    %v1316 = vsel %vm1255, %v1166, 0.0
    %1317 = vadd.xlane.f32.xlu0 %v1316
    %v1318 = vpop.xlane.xlu0 %1317
    %v1319 = vsel %vm1255, %v1169, 0.0
    %1320 = vadd.xlane.f32.xlu0 %v1319
    %v1321 = vpop.xlane.xlu0 %1320
    %v1322 = vsel %vm1255, %v1172, 0.0
    %1323 = vadd.xlane.f32.xlu0 %v1322
    %v1324 = vpop.xlane.xlu0 %1323
    %v1325 = vsel %vm1255, %v1175, 0.0
    %1326 = vadd.xlane.f32.xlu0 %v1325
    %v1327 = vpop.xlane.xlu0 %1326
    %v1328 = vsel %vm1255, %v1178, 0.0
    %1329 = vadd.xlane.f32.xlu0 %v1328
    %v1330 = vpop.xlane.xlu0 %1329
    %v1331 = vsel %vm1255, %v1181, 0.0
    %1332 = vadd.xlane.f32.xlu0 %v1331
    %v1333 = vpop.xlane.xlu0 %1332
    %v1334 = vsel %vm1255, %v1184, 0.0
    %1335 = vadd.xlane.f32.xlu0 %v1334
    %v1336 = vpop.xlane.xlu0 %1335
    %v1337 = vsel %vm1255, %v1187, 0.0
    %1338 = vadd.xlane.f32.xlu0 %v1337
    %v1339 = vpop.xlane.xlu0 %1338
    %v1340 = vsel %vm1255, %v1190, 0.0
    %1341 = vadd.xlane.f32.xlu0 %v1340
    %v1342 = vpop.xlane.xlu0 %1341
    %v1343 = vsel %vm1255, %v1193, 0.0
    %1344 = vadd.xlane.f32.xlu0 %v1343
    %v1345 = vpop.xlane.xlu0 %1344
    %v1346 = vsel %vm1255, %v1196, 0.0
    %1347 = vadd.xlane.f32.xlu0 %v1346
    %v1348 = vpop.xlane.xlu0 %1347
    %v1349 = vsel %vm1255, %v1199, 0.0
    %1350 = vadd.xlane.f32.xlu0 %v1349
    %v1351 = vpop.xlane.xlu0 %1350
    %v1352 = vsel %vm1255, %v1202, 0.0
    %1353 = vadd.xlane.f32.xlu0 %v1352
    %v1354 = vpop.xlane.xlu0 %1353
    %v1355 = vsel %vm1255, %v1205, 0.0
    %1356 = vadd.xlane.f32.xlu0 %v1355
    %v1357 = vpop.xlane.xlu0 %1356
    %v1358 = vsel %vm1255, %v1208, 0.0
    %1359 = vadd.xlane.f32.xlu0 %v1358
    %v1360 = vpop.xlane.xlu0 %1359
    %v1361 = vsel %vm1255, %v1211, 0.0
    %1362 = vadd.xlane.f32.xlu0 %v1361
    %v1363 = vpop.xlane.xlu0 %1362
    %v1364 = vsel %vm1255, %v1214, 0.0
    %1365 = vadd.xlane.f32.xlu0 %v1364
    %v1366 = vpop.xlane.xlu0 %1365
    %v1367 = vsel %vm1255, %v1217, 0.0
    %1368 = vadd.xlane.f32.xlu0 %v1367
    %v1369 = vpop.xlane.xlu0 %1368
    %v1370 = vsel %vm1255, %v1220, 0.0
    %1371 = vadd.xlane.f32.xlu0 %v1370
    %v1372 = vpop.xlane.xlu0 %1371
    %v1373 = vsel %vm1255, %v1223, 0.0
    %1374 = vadd.xlane.f32.xlu0 %v1373
    %v1375 = vpop.xlane.xlu0 %1374
    %v1376 = vsel %vm1255, %v1226, 0.0
    %1377 = vadd.xlane.f32.xlu0 %v1376
    %v1378 = vpop.xlane.xlu0 %1377
    %v1379 = vsel %vm1255, %v1229, 0.0
    %1380 = vadd.xlane.f32.xlu0 %v1379
    %v1381 = vpop.xlane.xlu0 %1380
    %v1382 = vsel %vm1255, %v1232, 0.0
    %1383 = vadd.xlane.f32.xlu0 %v1382
    %v1384 = vpop.xlane.xlu0 %1383
    %v1385 = vsel %vm1255, %v1235, 0.0
    %1386 = vadd.xlane.f32.xlu0 %v1385
    %v1387 = vpop.xlane.xlu0 %1386
    %v1388 = vsel %vm1255, %v1238, 0.0
    %1389 = vadd.xlane.f32.xlu0 %v1388
    %v1390 = vpop.xlane.xlu0 %1389
    %v1391 = vsel %vm1255, %v1241, 0.0
    %1392 = vadd.xlane.f32.xlu0 %v1391
    %v1393 = vpop.xlane.xlu0 %1392
    %v1394 = vsel %vm1255, %v1244, 0.0
    %1395 = vadd.xlane.f32.xlu0 %v1394
    %v1396 = vpop.xlane.xlu0 %1395
    %v1397 = vsel %vm1255, %v1247, 0.0
    %1398 = vadd.xlane.f32.xlu0 %v1397
    %v1399 = vpop.xlane.xlu0 %1398
    %v1400 = vsel %vm1255, %v1250, 0.0
    %1401 = vadd.xlane.f32.xlu0 %v1400
    %v1402 = vpop.xlane.xlu0 %1401
    %v1403 = vsel %vm1255, %v1253, 0.0
    %1404 = vadd.xlane.f32.xlu0 %v1403
    %v1405 = vpop.xlane.xlu0 %1404
    %v1406 = vmul.f32 %v1106, %v1106
    %v1407 = vmul.f32 %v1109, %v1109
    %v1408 = vmul.f32 %v1112, %v1112
    %v1409 = vmul.f32 %v1115, %v1115
    %v1410 = vmul.f32 %v1118, %v1118
    %v1411 = vmul.f32 %v1121, %v1121
    %v1412 = vmul.f32 %v1124, %v1124
    %v1413 = vmul.f32 %v1127, %v1127
    %v1414 = vmul.f32 %v1130, %v1130
    %v1415 = vmul.f32 %v1133, %v1133
    %v1416 = vmul.f32 %v1136, %v1136
    %v1417 = vmul.f32 %v1139, %v1139
    %v1418 = vmul.f32 %v1142, %v1142
    %v1419 = vmul.f32 %v1145, %v1145
    %v1420 = vmul.f32 %v1148, %v1148
    %v1421 = vmul.f32 %v1151, %v1151
    %v1422 = vmul.f32 %v1154, %v1154
    %v1423 = vmul.f32 %v1157, %v1157
    %v1424 = vmul.f32 %v1160, %v1160
    %v1425 = vmul.f32 %v1163, %v1163
    %v1426 = vmul.f32 %v1166, %v1166
    %v1427 = vmul.f32 %v1169, %v1169
    %v1428 = vmul.f32 %v1172, %v1172
    %v1429 = vmul.f32 %v1175, %v1175
    %v1430 = vmul.f32 %v1178, %v1178
    %v1431 = vmul.f32 %v1181, %v1181
    %v1432 = vmul.f32 %v1184, %v1184
    %v1433 = vmul.f32 %v1187, %v1187
    %v1434 = vmul.f32 %v1190, %v1190
    %v1435 = vmul.f32 %v1193, %v1193
    %v1436 = vmul.f32 %v1196, %v1196
    %v1437 = vmul.f32 %v1199, %v1199
    %v1438 = vmul.f32 %v1202, %v1202
    %v1439 = vmul.f32 %v1205, %v1205
    %v1440 = vmul.f32 %v1208, %v1208
    %v1441 = vmul.f32 %v1211, %v1211
    %v1442 = vmul.f32 %v1214, %v1214
    %v1443 = vmul.f32 %v1217, %v1217
    %v1444 = vmul.f32 %v1220, %v1220
    %v1445 = vmul.f32 %v1223, %v1223
    %v1446 = vmul.f32 %v1226, %v1226
    %v1447 = vmul.f32 %v1229, %v1229
    %v1448 = vmul.f32 %v1232, %v1232
    %v1449 = vmul.f32 %v1235, %v1235
    %v1450 = vmul.f32 %v1238, %v1238
    %v1451 = vmul.f32 %v1241, %v1241
    %v1452 = vmul.f32 %v1244, %v1244
    %v1453 = vmul.f32 %v1247, %v1247
    %v1454 = vmul.f32 %v1250, %v1250
    %v1455 = vmul.f32 %v1253, %v1253
    %v1456 = vsel %vm1255, %v1406, 0.0
    %1457 = vadd.xlane.f32.xlu0 %v1456
    %v1458 = vpop.xlane.xlu0 %1457
    %v1459 = vsel %vm1255, %v1407, 0.0
    %1460 = vadd.xlane.f32.xlu0 %v1459
    %v1461 = vpop.xlane.xlu0 %1460
    %v1462 = vsel %vm1255, %v1408, 0.0
    %1463 = vadd.xlane.f32.xlu0 %v1462
    %v1464 = vpop.xlane.xlu0 %1463
    %v1465 = vsel %vm1255, %v1409, 0.0
    %1466 = vadd.xlane.f32.xlu0 %v1465
    %v1467 = vpop.xlane.xlu0 %1466
    %v1468 = vsel %vm1255, %v1410, 0.0
    %1469 = vadd.xlane.f32.xlu0 %v1468
    %v1470 = vpop.xlane.xlu0 %1469
    %v1471 = vsel %vm1255, %v1411, 0.0
    %1472 = vadd.xlane.f32.xlu0 %v1471
    %v1473 = vpop.xlane.xlu0 %1472
    %v1474 = vsel %vm1255, %v1412, 0.0
    %1475 = vadd.xlane.f32.xlu0 %v1474
    %v1476 = vpop.xlane.xlu0 %1475
    %v1477 = vsel %vm1255, %v1413, 0.0
    %1478 = vadd.xlane.f32.xlu0 %v1477
    %v1479 = vpop.xlane.xlu0 %1478
    %v1480 = vsel %vm1255, %v1414, 0.0
    %1481 = vadd.xlane.f32.xlu0 %v1480
    %v1482 = vpop.xlane.xlu0 %1481
    %v1483 = vsel %vm1255, %v1415, 0.0
    %1484 = vadd.xlane.f32.xlu0 %v1483
    %v1485 = vpop.xlane.xlu0 %1484
    %v1486 = vsel %vm1255, %v1416, 0.0
    %1487 = vadd.xlane.f32.xlu0 %v1486
    %v1488 = vpop.xlane.xlu0 %1487
    %v1489 = vsel %vm1255, %v1417, 0.0
    %1490 = vadd.xlane.f32.xlu0 %v1489
    %v1491 = vpop.xlane.xlu0 %1490
    %v1492 = vsel %vm1255, %v1418, 0.0
    %1493 = vadd.xlane.f32.xlu0 %v1492
    %v1494 = vpop.xlane.xlu0 %1493
    %v1495 = vsel %vm1255, %v1419, 0.0
    %1496 = vadd.xlane.f32.xlu0 %v1495
    %v1497 = vpop.xlane.xlu0 %1496
    %v1498 = vsel %vm1255, %v1420, 0.0
    %1499 = vadd.xlane.f32.xlu0 %v1498
    %v1500 = vpop.xlane.xlu0 %1499
    %v1501 = vsel %vm1255, %v1421, 0.0
    %1502 = vadd.xlane.f32.xlu0 %v1501
    %v1503 = vpop.xlane.xlu0 %1502
    %v1504 = vsel %vm1255, %v1422, 0.0
    %1505 = vadd.xlane.f32.xlu0 %v1504
    %v1506 = vpop.xlane.xlu0 %1505
    %v1507 = vsel %vm1255, %v1423, 0.0
    %1508 = vadd.xlane.f32.xlu0 %v1507
    %v1509 = vpop.xlane.xlu0 %1508
    %v1510 = vsel %vm1255, %v1424, 0.0
    %1511 = vadd.xlane.f32.xlu0 %v1510
    %v1512 = vpop.xlane.xlu0 %1511
    %v1513 = vsel %vm1255, %v1425, 0.0
    %1514 = vadd.xlane.f32.xlu0 %v1513
    %v1515 = vpop.xlane.xlu0 %1514
    %v1516 = vsel %vm1255, %v1426, 0.0
    %1517 = vadd.xlane.f32.xlu0 %v1516
    %v1518 = vpop.xlane.xlu0 %1517
    %v1519 = vsel %vm1255, %v1427, 0.0
    %1520 = vadd.xlane.f32.xlu0 %v1519
    %v1521 = vpop.xlane.xlu0 %1520
    %v1522 = vsel %vm1255, %v1428, 0.0
    %1523 = vadd.xlane.f32.xlu0 %v1522
    %v1524 = vpop.xlane.xlu0 %1523
    %v1525 = vsel %vm1255, %v1429, 0.0
    %1526 = vadd.xlane.f32.xlu0 %v1525
    %v1527 = vpop.xlane.xlu0 %1526
    %v1528 = vsel %vm1255, %v1430, 0.0
    %1529 = vadd.xlane.f32.xlu0 %v1528
    %v1530 = vpop.xlane.xlu0 %1529
    %v1531 = vsel %vm1255, %v1431, 0.0
    %1532 = vadd.xlane.f32.xlu0 %v1531
    %v1533 = vpop.xlane.xlu0 %1532
    %v1534 = vsel %vm1255, %v1432, 0.0
    %1535 = vadd.xlane.f32.xlu0 %v1534
    %v1536 = vpop.xlane.xlu0 %1535
    %v1537 = vsel %vm1255, %v1433, 0.0
    %1538 = vadd.xlane.f32.xlu0 %v1537
    %v1539 = vpop.xlane.xlu0 %1538
    %v1540 = vsel %vm1255, %v1434, 0.0
    %1541 = vadd.xlane.f32.xlu0 %v1540
    %v1542 = vpop.xlane.xlu0 %1541
    %v1543 = vsel %vm1255, %v1435, 0.0
    %1544 = vadd.xlane.f32.xlu0 %v1543
    %v1545 = vpop.xlane.xlu0 %1544
    %v1546 = vsel %vm1255, %v1436, 0.0
    %1547 = vadd.xlane.f32.xlu0 %v1546
    %v1548 = vpop.xlane.xlu0 %1547
    %v1549 = vsel %vm1255, %v1437, 0.0
    %1550 = vadd.xlane.f32.xlu0 %v1549
    %v1551 = vpop.xlane.xlu0 %1550
    %v1552 = vsel %vm1255, %v1438, 0.0
    %1553 = vadd.xlane.f32.xlu0 %v1552
    %v1554 = vpop.xlane.xlu0 %1553
    %v1555 = vsel %vm1255, %v1439, 0.0
    %1556 = vadd.xlane.f32.xlu0 %v1555
    %v1557 = vpop.xlane.xlu0 %1556
    %v1558 = vsel %vm1255, %v1440, 0.0
    %1559 = vadd.xlane.f32.xlu0 %v1558
    %v1560 = vpop.xlane.xlu0 %1559
    %v1561 = vsel %vm1255, %v1441, 0.0
    %1562 = vadd.xlane.f32.xlu0 %v1561
    %v1563 = vpop.xlane.xlu0 %1562
    %v1564 = vsel %vm1255, %v1442, 0.0
    %1565 = vadd.xlane.f32.xlu0 %v1564
    %v1566 = vpop.xlane.xlu0 %1565
    %v1567 = vsel %vm1255, %v1443, 0.0
    %1568 = vadd.xlane.f32.xlu0 %v1567
    %v1569 = vpop.xlane.xlu0 %1568
    %v1570 = vsel %vm1255, %v1444, 0.0
    %1571 = vadd.xlane.f32.xlu0 %v1570
    %v1572 = vpop.xlane.xlu0 %1571
    %v1573 = vsel %vm1255, %v1445, 0.0
    %1574 = vadd.xlane.f32.xlu0 %v1573
    %v1575 = vpop.xlane.xlu0 %1574
    %v1576 = vsel %vm1255, %v1446, 0.0
    %1577 = vadd.xlane.f32.xlu0 %v1576
    %v1578 = vpop.xlane.xlu0 %1577
    %v1579 = vsel %vm1255, %v1447, 0.0
    %1580 = vadd.xlane.f32.xlu0 %v1579
    %v1581 = vpop.xlane.xlu0 %1580
    %v1582 = vsel %vm1255, %v1448, 0.0
    %1583 = vadd.xlane.f32.xlu0 %v1582
    %v1584 = vpop.xlane.xlu0 %1583
    %v1585 = vsel %vm1255, %v1449, 0.0
    %1586 = vadd.xlane.f32.xlu0 %v1585
    %v1587 = vpop.xlane.xlu0 %1586
    %v1588 = vsel %vm1255, %v1450, 0.0
    %1589 = vadd.xlane.f32.xlu0 %v1588
    %v1590 = vpop.xlane.xlu0 %1589
    %v1591 = vsel %vm1255, %v1451, 0.0
    %1592 = vadd.xlane.f32.xlu0 %v1591
    %v1593 = vpop.xlane.xlu0 %1592
    %v1594 = vsel %vm1255, %v1452, 0.0
    %1595 = vadd.xlane.f32.xlu0 %v1594
    %v1596 = vpop.xlane.xlu0 %1595
    %v1597 = vsel %vm1255, %v1453, 0.0
    %1598 = vadd.xlane.f32.xlu0 %v1597
    %v1599 = vpop.xlane.xlu0 %1598
    %v1600 = vsel %vm1255, %v1454, 0.0
    %1601 = vadd.xlane.f32.xlu0 %v1600
    %v1602 = vpop.xlane.xlu0 %1601
    %v1603 = vsel %vm1255, %v1455, 0.0
    %1604 = vadd.xlane.f32.xlu0 %v1603
    %v1605 = vpop.xlane.xlu0 %1604
    %v1606 = vmul.f32 %v1258, 0.020408163
    %v1607 = vmul.f32 %v1261, 0.020408163
    %v1608 = vmul.f32 %v1264, 0.020408163
    %v1609 = vmul.f32 %v1267, 0.020408163
    %v1610 = vmul.f32 %v1270, 0.020408163
    %v1611 = vmul.f32 %v1273, 0.020408163
    %v1612 = vmul.f32 %v1276, 0.020408163
    %v1613 = vmul.f32 %v1279, 0.020408163
    %v1614 = vmul.f32 %v1282, 0.020408163
    %v1615 = vmul.f32 %v1285, 0.020408163
    %v1616 = vmul.f32 %v1288, 0.020408163
    %v1617 = vmul.f32 %v1291, 0.020408163
    %v1618 = vmul.f32 %v1294, 0.020408163
    %v1619 = vmul.f32 %v1297, 0.020408163
    %v1620 = vmul.f32 %v1300, 0.020408163
    %v1621 = vmul.f32 %v1303, 0.020408163
    %v1622 = vmul.f32 %v1306, 0.020408163
    %v1623 = vmul.f32 %v1309, 0.020408163
    %v1624 = vmul.f32 %v1312, 0.020408163
    %v1625 = vmul.f32 %v1315, 0.020408163
    %v1626 = vmul.f32 %v1318, 0.020408163
    %v1627 = vmul.f32 %v1321, 0.020408163
    %v1628 = vmul.f32 %v1324, 0.020408163
    %v1629 = vmul.f32 %v1327, 0.020408163
    %v1630 = vmul.f32 %v1330, 0.020408163
    %v1631 = vmul.f32 %v1333, 0.020408163
    %v1632 = vmul.f32 %v1336, 0.020408163
    %v1633 = vmul.f32 %v1339, 0.020408163
    %v1634 = vmul.f32 %v1342, 0.020408163
    %v1635 = vmul.f32 %v1345, 0.020408163
    %v1636 = vmul.f32 %v1348, 0.020408163
    %v1637 = vmul.f32 %v1351, 0.020408163
    %v1638 = vmul.f32 %v1354, 0.020408163
    %v1639 = vmul.f32 %v1357, 0.020408163
    %v1640 = vmul.f32 %v1360, 0.020408163
    %v1641 = vmul.f32 %v1363, 0.020408163
    %v1642 = vmul.f32 %v1366, 0.020408163
    %v1643 = vmul.f32 %v1369, 0.020408163
    %v1644 = vmul.f32 %v1372, 0.020408163
    %v1645 = vmul.f32 %v1375, 0.020408163
    %v1646 = vmul.f32 %v1378, 0.020408163
    %v1647 = vmul.f32 %v1381, 0.020408163
    %v1648 = vmul.f32 %v1384, 0.020408163
    %v1649 = vmul.f32 %v1387, 0.020408163
    %v1650 = vmul.f32 %v1390, 0.020408163
    %v1651 = vmul.f32 %v1393, 0.020408163
    %v1652 = vmul.f32 %v1396, 0.020408163
    %v1653 = vmul.f32 %v1399, 0.020408163
    %v1654 = vmul.f32 %v1402, 0.020408163
    %v1655 = vmul.f32 %v1405, 0.020408163
    %v1656 = vmul.f32 %v1458, 0.020408163
    %v1657 = vmul.f32 %v1461, 0.020408163
    %v1658 = vmul.f32 %v1464, 0.020408163
    %v1659 = vmul.f32 %v1467, 0.020408163
    %v1660 = vmul.f32 %v1470, 0.020408163
    %v1661 = vmul.f32 %v1473, 0.020408163
    %v1662 = vmul.f32 %v1476, 0.020408163
    %v1663 = vmul.f32 %v1479, 0.020408163
    %v1664 = vmul.f32 %v1482, 0.020408163
    %v1665 = vmul.f32 %v1485, 0.020408163
    %v1666 = vmul.f32 %v1488, 0.020408163
    %v1667 = vmul.f32 %v1491, 0.020408163
    %v1668 = vmul.f32 %v1494, 0.020408163
    %v1669 = vmul.f32 %v1497, 0.020408163
    %v1670 = vmul.f32 %v1500, 0.020408163
    %v1671 = vmul.f32 %v1503, 0.020408163
    %v1672 = vmul.f32 %v1506, 0.020408163
    %v1673 = vmul.f32 %v1509, 0.020408163
    %v1674 = vmul.f32 %v1512, 0.020408163
    %v1675 = vmul.f32 %v1515, 0.020408163
    %v1676 = vmul.f32 %v1518, 0.020408163
    %v1677 = vmul.f32 %v1521, 0.020408163
    %v1678 = vmul.f32 %v1524, 0.020408163
    %v1679 = vmul.f32 %v1527, 0.020408163
    %v1680 = vmul.f32 %v1530, 0.020408163
    %v1681 = vmul.f32 %v1533, 0.020408163
    %v1682 = vmul.f32 %v1536, 0.020408163
    %v1683 = vmul.f32 %v1539, 0.020408163
    %v1684 = vmul.f32 %v1542, 0.020408163
    %v1685 = vmul.f32 %v1545, 0.020408163
    %v1686 = vmul.f32 %v1548, 0.020408163
    %v1687 = vmul.f32 %v1551, 0.020408163
    %v1688 = vmul.f32 %v1554, 0.020408163
    %v1689 = vmul.f32 %v1557, 0.020408163
    %v1690 = vmul.f32 %v1560, 0.020408163
    %v1691 = vmul.f32 %v1563, 0.020408163
    %v1692 = vmul.f32 %v1566, 0.020408163
    %v1693 = vmul.f32 %v1569, 0.020408163
    %v1694 = vmul.f32 %v1572, 0.020408163
    %v1695 = vmul.f32 %v1575, 0.020408163
    %v1696 = vmul.f32 %v1578, 0.020408163
    %v1697 = vmul.f32 %v1581, 0.020408163
    %v1698 = vmul.f32 %v1584, 0.020408163
    %v1699 = vmul.f32 %v1587, 0.020408163
    %v1700 = vmul.f32 %v1590, 0.020408163
    %v1701 = vmul.f32 %v1593, 0.020408163
    %v1702 = vmul.f32 %v1596, 0.020408163
    %v1703 = vmul.f32 %v1599, 0.020408163
    %v1704 = vmul.f32 %v1602, 0.020408163
    %v1705 = vmul.f32 %v1605, 0.020408163
    %v1706 = vmul.f32 %v1606, %v1606
    %v1707 = vmul.f32 %v1607, %v1607
    %v1708 = vmul.f32 %v1608, %v1608
    %v1709 = vmul.f32 %v1609, %v1609
    %v1710 = vmul.f32 %v1610, %v1610
    %v1711 = vmul.f32 %v1611, %v1611
    %v1712 = vmul.f32 %v1612, %v1612
    %v1713 = vmul.f32 %v1613, %v1613
    %v1714 = vmul.f32 %v1614, %v1614
    %v1715 = vmul.f32 %v1615, %v1615
    %v1716 = vmul.f32 %v1616, %v1616
    %v1717 = vmul.f32 %v1617, %v1617
    %v1718 = vmul.f32 %v1618, %v1618
    %v1719 = vmul.f32 %v1619, %v1619
    %v1720 = vmul.f32 %v1620, %v1620
    %v1721 = vmul.f32 %v1621, %v1621
    %v1722 = vmul.f32 %v1622, %v1622
    %v1723 = vmul.f32 %v1623, %v1623
    %v1724 = vmul.f32 %v1624, %v1624
    %v1725 = vmul.f32 %v1625, %v1625
    %v1726 = vmul.f32 %v1626, %v1626
    %v1727 = vmul.f32 %v1627, %v1627
    %v1728 = vmul.f32 %v1628, %v1628
    %v1729 = vmul.f32 %v1629, %v1629
    %v1730 = vmul.f32 %v1630, %v1630
    %v1731 = vmul.f32 %v1631, %v1631
    %v1732 = vmul.f32 %v1632, %v1632
    %v1733 = vmul.f32 %v1633, %v1633
    %v1734 = vmul.f32 %v1634, %v1634
    %v1735 = vmul.f32 %v1635, %v1635
    %v1736 = vmul.f32 %v1636, %v1636
    %v1737 = vmul.f32 %v1637, %v1637
    %v1738 = vmul.f32 %v1638, %v1638
    %v1739 = vmul.f32 %v1639, %v1639
    %v1740 = vmul.f32 %v1640, %v1640
    %v1741 = vmul.f32 %v1641, %v1641
    %v1742 = vmul.f32 %v1642, %v1642
    %v1743 = vmul.f32 %v1643, %v1643
    %v1744 = vmul.f32 %v1644, %v1644
    %v1745 = vmul.f32 %v1645, %v1645
    %v1746 = vmul.f32 %v1646, %v1646
    %v1747 = vmul.f32 %v1647, %v1647
    %v1748 = vmul.f32 %v1648, %v1648
    %v1749 = vmul.f32 %v1649, %v1649
    %v1750 = vmul.f32 %v1650, %v1650
    %v1751 = vmul.f32 %v1651, %v1651
    %v1752 = vmul.f32 %v1652, %v1652
    %v1753 = vmul.f32 %v1653, %v1653
    %v1754 = vmul.f32 %v1654, %v1654
    %v1755 = vmul.f32 %v1655, %v1655
    %v1756 = vsub.f32 %v1656, %v1706
    %v1757 = vsub.f32 %v1657, %v1707
    %v1758 = vsub.f32 %v1658, %v1708
    %v1759 = vsub.f32 %v1659, %v1709
    %v1760 = vsub.f32 %v1660, %v1710
    %v1761 = vsub.f32 %v1661, %v1711
    %v1762 = vsub.f32 %v1662, %v1712
    %v1763 = vsub.f32 %v1663, %v1713
    %v1764 = vsub.f32 %v1664, %v1714
    %v1765 = vsub.f32 %v1665, %v1715
    %v1766 = vsub.f32 %v1666, %v1716
    %v1767 = vsub.f32 %v1667, %v1717
    %v1768 = vsub.f32 %v1668, %v1718
    %v1769 = vsub.f32 %v1669, %v1719
    %v1770 = vsub.f32 %v1670, %v1720
    %v1771 = vsub.f32 %v1671, %v1721
    %v1772 = vsub.f32 %v1672, %v1722
    %v1773 = vsub.f32 %v1673, %v1723
    %v1774 = vsub.f32 %v1674, %v1724
    %v1775 = vsub.f32 %v1675, %v1725
    %v1776 = vsub.f32 %v1676, %v1726
    %v1777 = vsub.f32 %v1677, %v1727
    %v1778 = vsub.f32 %v1678, %v1728
    %v1779 = vsub.f32 %v1679, %v1729
    %v1780 = vsub.f32 %v1680, %v1730
    %v1781 = vsub.f32 %v1681, %v1731
    %v1782 = vsub.f32 %v1682, %v1732
    %v1783 = vsub.f32 %v1683, %v1733
    %v1784 = vsub.f32 %v1684, %v1734
    %v1785 = vsub.f32 %v1685, %v1735
    %v1786 = vsub.f32 %v1686, %v1736
    %v1787 = vsub.f32 %v1687, %v1737
    %v1788 = vsub.f32 %v1688, %v1738
    %v1789 = vsub.f32 %v1689, %v1739
    %v1790 = vsub.f32 %v1690, %v1740
    %v1791 = vsub.f32 %v1691, %v1741
    %v1792 = vsub.f32 %v1692, %v1742
    %v1793 = vsub.f32 %v1693, %v1743
    %v1794 = vsub.f32 %v1694, %v1744
    %v1795 = vsub.f32 %v1695, %v1745
    %v1796 = vsub.f32 %v1696, %v1746
    %v1797 = vsub.f32 %v1697, %v1747
    %v1798 = vsub.f32 %v1698, %v1748
    %v1799 = vsub.f32 %v1699, %v1749
    %v1800 = vsub.f32 %v1700, %v1750
    %v1801 = vsub.f32 %v1701, %v1751
    %v1802 = vsub.f32 %v1702, %v1752
    %v1803 = vsub.f32 %v1703, %v1753
    %v1804 = vsub.f32 %v1704, %v1754
    %v1805 = vsub.f32 %v1705, %v1755
    %v1806 = vmax.f32 %v1756, 0.0
    %v1807 = vmax.f32 %v1757, 0.0
    %v1808 = vmax.f32 %v1758, 0.0
    %v1809 = vmax.f32 %v1759, 0.0
    %v1810 = vmax.f32 %v1760, 0.0
    %v1811 = vmax.f32 %v1761, 0.0
    %v1812 = vmax.f32 %v1762, 0.0
    %v1813 = vmax.f32 %v1763, 0.0
    %v1814 = vmax.f32 %v1764, 0.0
    %v1815 = vmax.f32 %v1765, 0.0
    %v1816 = vmax.f32 %v1766, 0.0
    %v1817 = vmax.f32 %v1767, 0.0
    %v1818 = vmax.f32 %v1768, 0.0
    %v1819 = vmax.f32 %v1769, 0.0
    %v1820 = vmax.f32 %v1770, 0.0
    %v1821 = vmax.f32 %v1771, 0.0
    %v1822 = vmax.f32 %v1772, 0.0
    %v1823 = vmax.f32 %v1773, 0.0
    %v1824 = vmax.f32 %v1774, 0.0
    %v1825 = vmax.f32 %v1775, 0.0
    %v1826 = vmax.f32 %v1776, 0.0
    %v1827 = vmax.f32 %v1777, 0.0
    %v1828 = vmax.f32 %v1778, 0.0
    %v1829 = vmax.f32 %v1779, 0.0
    %v1830 = vmax.f32 %v1780, 0.0
    %v1831 = vmax.f32 %v1781, 0.0
    %v1832 = vmax.f32 %v1782, 0.0
    %v1833 = vmax.f32 %v1783, 0.0
    %v1834 = vmax.f32 %v1784, 0.0
    %v1835 = vmax.f32 %v1785, 0.0
    %v1836 = vmax.f32 %v1786, 0.0
    %v1837 = vmax.f32 %v1787, 0.0
    %v1838 = vmax.f32 %v1788, 0.0
    %v1839 = vmax.f32 %v1789, 0.0
    %v1840 = vmax.f32 %v1790, 0.0
    %v1841 = vmax.f32 %v1791, 0.0
    %v1842 = vmax.f32 %v1792, 0.0
    %v1843 = vmax.f32 %v1793, 0.0
    %v1844 = vmax.f32 %v1794, 0.0
    %v1845 = vmax.f32 %v1795, 0.0
    %v1846 = vmax.f32 %v1796, 0.0
    %v1847 = vmax.f32 %v1797, 0.0
    %v1848 = vmax.f32 %v1798, 0.0
    %v1849 = vmax.f32 %v1799, 0.0
    %v1850 = vmax.f32 %v1800, 0.0
    %v1851 = vmax.f32 %v1801, 0.0
    %v1852 = vmax.f32 %v1802, 0.0
    %v1853 = vmax.f32 %v1803, 0.0
    %v1854 = vmax.f32 %v1804, 0.0
    %v1855 = vmax.f32 %v1805, 0.0
    %v1856 = vadd.f32 %v1806, 1e-05
    %v1857 = vadd.f32 %v1807, 1e-05
    %v1858 = vadd.f32 %v1808, 1e-05
    %v1859 = vadd.f32 %v1809, 1e-05
    %v1860 = vadd.f32 %v1810, 1e-05
    %v1861 = vadd.f32 %v1811, 1e-05
    %v1862 = vadd.f32 %v1812, 1e-05
    %v1863 = vadd.f32 %v1813, 1e-05
    %v1864 = vadd.f32 %v1814, 1e-05
    %v1865 = vadd.f32 %v1815, 1e-05
    %v1866 = vadd.f32 %v1816, 1e-05
    %v1867 = vadd.f32 %v1817, 1e-05
    %v1868 = vadd.f32 %v1818, 1e-05
    %v1869 = vadd.f32 %v1819, 1e-05
    %v1870 = vadd.f32 %v1820, 1e-05
    %v1871 = vadd.f32 %v1821, 1e-05
    %v1872 = vadd.f32 %v1822, 1e-05
    %v1873 = vadd.f32 %v1823, 1e-05
    %v1874 = vadd.f32 %v1824, 1e-05
    %v1875 = vadd.f32 %v1825, 1e-05
    %v1876 = vadd.f32 %v1826, 1e-05
    %v1877 = vadd.f32 %v1827, 1e-05
    %v1878 = vadd.f32 %v1828, 1e-05
    %v1879 = vadd.f32 %v1829, 1e-05
    %v1880 = vadd.f32 %v1830, 1e-05
    %v1881 = vadd.f32 %v1831, 1e-05
    %v1882 = vadd.f32 %v1832, 1e-05
    %v1883 = vadd.f32 %v1833, 1e-05
    %v1884 = vadd.f32 %v1834, 1e-05
    %v1885 = vadd.f32 %v1835, 1e-05
    %v1886 = vadd.f32 %v1836, 1e-05
    %v1887 = vadd.f32 %v1837, 1e-05
    %v1888 = vadd.f32 %v1838, 1e-05
    %v1889 = vadd.f32 %v1839, 1e-05
    %v1890 = vadd.f32 %v1840, 1e-05
    %v1891 = vadd.f32 %v1841, 1e-05
    %v1892 = vadd.f32 %v1842, 1e-05
    %v1893 = vadd.f32 %v1843, 1e-05
    %v1894 = vadd.f32 %v1844, 1e-05
    %v1895 = vadd.f32 %v1845, 1e-05
    %v1896 = vadd.f32 %v1846, 1e-05
    %v1897 = vadd.f32 %v1847, 1e-05
    %v1898 = vadd.f32 %v1848, 1e-05
    %v1899 = vadd.f32 %v1849, 1e-05
    %v1900 = vadd.f32 %v1850, 1e-05
    %v1901 = vadd.f32 %v1851, 1e-05
    %v1902 = vadd.f32 %v1852, 1e-05
    %v1903 = vadd.f32 %v1853, 1e-05
    %v1904 = vadd.f32 %v1854, 1e-05
    %v1905 = vadd.f32 %v1855, 1e-05
    %v1906 = vrsqrt.pop %v1856
    %v1907 = vmul.f32 %v1906, %v1856
    %v1908 = vmul.f32 %v1907, %v1906
    %v1909 = vmul.f32 0.5, %v1908
    %v1910 = vsub.f32 1.5, %v1909
    %v1911 = vmul.f32 %v1906, %v1910
    %vm1912 = vweird.f32 %v1856
    %vm1913 = vweird.f32 %v1906
    %vm1914 = vmor %vm1912, %vm1913
    %v1915 = vsel %vm1914, %v1906, %v1911
    %v1916 = vrsqrt.pop %v1857
    %v1917 = vmul.f32 %v1916, %v1857
    %v1918 = vmul.f32 %v1917, %v1916
    %v1919 = vmul.f32 0.5, %v1918
    %v1920 = vsub.f32 1.5, %v1919
    %v1921 = vmul.f32 %v1916, %v1920
    %vm1922 = vweird.f32 %v1857
    %vm1923 = vweird.f32 %v1916
    %vm1924 = vmor %vm1922, %vm1923
    %v1925 = vsel %vm1924, %v1916, %v1921
    %v1926 = vrsqrt.pop %v1858
    %v1927 = vmul.f32 %v1926, %v1858
    %v1928 = vmul.f32 %v1927, %v1926
    %v1929 = vmul.f32 0.5, %v1928
    %v1930 = vsub.f32 1.5, %v1929
    %v1931 = vmul.f32 %v1926, %v1930
    %vm1932 = vweird.f32 %v1858
    %vm1933 = vweird.f32 %v1926
    %vm1934 = vmor %vm1932, %vm1933
    %v1935 = vsel %vm1934, %v1926, %v1931
    %v1936 = vrsqrt.pop %v1859
    %v1937 = vmul.f32 %v1936, %v1859
    %v1938 = vmul.f32 %v1937, %v1936
    %v1939 = vmul.f32 0.5, %v1938
    %v1940 = vsub.f32 1.5, %v1939
    %v1941 = vmul.f32 %v1936, %v1940
    %vm1942 = vweird.f32 %v1859
    %vm1943 = vweird.f32 %v1936
    %vm1944 = vmor %vm1942, %vm1943
    %v1945 = vsel %vm1944, %v1936, %v1941
    %v1946 = vrsqrt.pop %v1860
    %v1947 = vmul.f32 %v1946, %v1860
    %v1948 = vmul.f32 %v1947, %v1946
    %v1949 = vmul.f32 0.5, %v1948
    %v1950 = vsub.f32 1.5, %v1949
    %v1951 = vmul.f32 %v1946, %v1950
    %vm1952 = vweird.f32 %v1860
    %vm1953 = vweird.f32 %v1946
    %vm1954 = vmor %vm1952, %vm1953
    %v1955 = vsel %vm1954, %v1946, %v1951
    %v1956 = vrsqrt.pop %v1861
    %v1957 = vmul.f32 %v1956, %v1861
    %v1958 = vmul.f32 %v1957, %v1956
    %v1959 = vmul.f32 0.5, %v1958
    %v1960 = vsub.f32 1.5, %v1959
    %v1961 = vmul.f32 %v1956, %v1960
    %vm1962 = vweird.f32 %v1861
    %vm1963 = vweird.f32 %v1956
    %vm1964 = vmor %vm1962, %vm1963
    %v1965 = vsel %vm1964, %v1956, %v1961
    %v1966 = vrsqrt.pop %v1862
    %v1967 = vmul.f32 %v1966, %v1862
    %v1968 = vmul.f32 %v1967, %v1966
    %v1969 = vmul.f32 0.5, %v1968
    %v1970 = vsub.f32 1.5, %v1969
    %v1971 = vmul.f32 %v1966, %v1970
    %vm1972 = vweird.f32 %v1862
    %vm1973 = vweird.f32 %v1966
    %vm1974 = vmor %vm1972, %vm1973
    %v1975 = vsel %vm1974, %v1966, %v1971
    %v1976 = vrsqrt.pop %v1863
    %v1977 = vmul.f32 %v1976, %v1863
    %v1978 = vmul.f32 %v1977, %v1976
    %v1979 = vmul.f32 0.5, %v1978
    %v1980 = vsub.f32 1.5, %v1979
    %v1981 = vmul.f32 %v1976, %v1980
    %vm1982 = vweird.f32 %v1863
    %vm1983 = vweird.f32 %v1976
    %vm1984 = vmor %vm1982, %vm1983
    %v1985 = vsel %vm1984, %v1976, %v1981
    %v1986 = vrsqrt.pop %v1864
    %v1987 = vmul.f32 %v1986, %v1864
    %v1988 = vmul.f32 %v1987, %v1986
    %v1989 = vmul.f32 0.5, %v1988
    %v1990 = vsub.f32 1.5, %v1989
    %v1991 = vmul.f32 %v1986, %v1990
    %vm1992 = vweird.f32 %v1864
    %vm1993 = vweird.f32 %v1986
    %vm1994 = vmor %vm1992, %vm1993
    %v1995 = vsel %vm1994, %v1986, %v1991
    %v1996 = vrsqrt.pop %v1865
    %v1997 = vmul.f32 %v1996, %v1865
    %v1998 = vmul.f32 %v1997, %v1996
    %v1999 = vmul.f32 0.5, %v1998
    %v2000 = vsub.f32 1.5, %v1999
    %v2001 = vmul.f32 %v1996, %v2000
    %vm2002 = vweird.f32 %v1865
    %vm2003 = vweird.f32 %v1996
    %vm2004 = vmor %vm2002, %vm2003
    %v2005 = vsel %vm2004, %v1996, %v2001
    %v2006 = vrsqrt.pop %v1866
    %v2007 = vmul.f32 %v2006, %v1866
    %v2008 = vmul.f32 %v2007, %v2006
    %v2009 = vmul.f32 0.5, %v2008
    %v2010 = vsub.f32 1.5, %v2009
    %v2011 = vmul.f32 %v2006, %v2010
    %vm2012 = vweird.f32 %v1866
    %vm2013 = vweird.f32 %v2006
    %vm2014 = vmor %vm2012, %vm2013
    %v2015 = vsel %vm2014, %v2006, %v2011
    %v2016 = vrsqrt.pop %v1867
    %v2017 = vmul.f32 %v2016, %v1867
    %v2018 = vmul.f32 %v2017, %v2016
    %v2019 = vmul.f32 0.5, %v2018
    %v2020 = vsub.f32 1.5, %v2019
    %v2021 = vmul.f32 %v2016, %v2020
    %vm2022 = vweird.f32 %v1867
    %vm2023 = vweird.f32 %v2016
    %vm2024 = vmor %vm2022, %vm2023
    %v2025 = vsel %vm2024, %v2016, %v2021
    %v2026 = vrsqrt.pop %v1868
    %v2027 = vmul.f32 %v2026, %v1868
    %v2028 = vmul.f32 %v2027, %v2026
    %v2029 = vmul.f32 0.5, %v2028
    %v2030 = vsub.f32 1.5, %v2029
    %v2031 = vmul.f32 %v2026, %v2030
    %vm2032 = vweird.f32 %v1868
    %vm2033 = vweird.f32 %v2026
    %vm2034 = vmor %vm2032, %vm2033
    %v2035 = vsel %vm2034, %v2026, %v2031
    %v2036 = vrsqrt.pop %v1869
    %v2037 = vmul.f32 %v2036, %v1869
    %v2038 = vmul.f32 %v2037, %v2036
    %v2039 = vmul.f32 0.5, %v2038
    %v2040 = vsub.f32 1.5, %v2039
    %v2041 = vmul.f32 %v2036, %v2040
    %vm2042 = vweird.f32 %v1869
    %vm2043 = vweird.f32 %v2036
    %vm2044 = vmor %vm2042, %vm2043
    %v2045 = vsel %vm2044, %v2036, %v2041
    %v2046 = vrsqrt.pop %v1870
    %v2047 = vmul.f32 %v2046, %v1870
    %v2048 = vmul.f32 %v2047, %v2046
    %v2049 = vmul.f32 0.5, %v2048
    %v2050 = vsub.f32 1.5, %v2049
    %v2051 = vmul.f32 %v2046, %v2050
    %vm2052 = vweird.f32 %v1870
    %vm2053 = vweird.f32 %v2046
    %vm2054 = vmor %vm2052, %vm2053
    %v2055 = vsel %vm2054, %v2046, %v2051
    %v2056 = vrsqrt.pop %v1871
    %v2057 = vmul.f32 %v2056, %v1871
    %v2058 = vmul.f32 %v2057, %v2056
    %v2059 = vmul.f32 0.5, %v2058
    %v2060 = vsub.f32 1.5, %v2059
    %v2061 = vmul.f32 %v2056, %v2060
    %vm2062 = vweird.f32 %v1871
    %vm2063 = vweird.f32 %v2056
    %vm2064 = vmor %vm2062, %vm2063
    %v2065 = vsel %vm2064, %v2056, %v2061
    %v2066 = vrsqrt.pop %v1872
    %v2067 = vmul.f32 %v2066, %v1872
    %v2068 = vmul.f32 %v2067, %v2066
    %v2069 = vmul.f32 0.5, %v2068
    %v2070 = vsub.f32 1.5, %v2069
    %v2071 = vmul.f32 %v2066, %v2070
    %vm2072 = vweird.f32 %v1872
    %vm2073 = vweird.f32 %v2066
    %vm2074 = vmor %vm2072, %vm2073
    %v2075 = vsel %vm2074, %v2066, %v2071
    %v2076 = vrsqrt.pop %v1873
    %v2077 = vmul.f32 %v2076, %v1873
    %v2078 = vmul.f32 %v2077, %v2076
    %v2079 = vmul.f32 0.5, %v2078
    %v2080 = vsub.f32 1.5, %v2079
    %v2081 = vmul.f32 %v2076, %v2080
    %vm2082 = vweird.f32 %v1873
    %vm2083 = vweird.f32 %v2076
    %vm2084 = vmor %vm2082, %vm2083
    %v2085 = vsel %vm2084, %v2076, %v2081
    %v2086 = vrsqrt.pop %v1874
    %v2087 = vmul.f32 %v2086, %v1874
    %v2088 = vmul.f32 %v2087, %v2086
    %v2089 = vmul.f32 0.5, %v2088
    %v2090 = vsub.f32 1.5, %v2089
    %v2091 = vmul.f32 %v2086, %v2090
    %vm2092 = vweird.f32 %v1874
    %vm2093 = vweird.f32 %v2086
    %vm2094 = vmor %vm2092, %vm2093
    %v2095 = vsel %vm2094, %v2086, %v2091
    %v2096 = vrsqrt.pop %v1875
    %v2097 = vmul.f32 %v2096, %v1875
    %v2098 = vmul.f32 %v2097, %v2096
    %v2099 = vmul.f32 0.5, %v2098
    %v2100 = vsub.f32 1.5, %v2099
    %v2101 = vmul.f32 %v2096, %v2100
    %vm2102 = vweird.f32 %v1875
    %vm2103 = vweird.f32 %v2096
    %vm2104 = vmor %vm2102, %vm2103
    %v2105 = vsel %vm2104, %v2096, %v2101
    %v2106 = vrsqrt.pop %v1876
    %v2107 = vmul.f32 %v2106, %v1876
    %v2108 = vmul.f32 %v2107, %v2106
    %v2109 = vmul.f32 0.5, %v2108
    %v2110 = vsub.f32 1.5, %v2109
    %v2111 = vmul.f32 %v2106, %v2110
    %vm2112 = vweird.f32 %v1876
    %vm2113 = vweird.f32 %v2106
    %vm2114 = vmor %vm2112, %vm2113
    %v2115 = vsel %vm2114, %v2106, %v2111
    %v2116 = vrsqrt.pop %v1877
    %v2117 = vmul.f32 %v2116, %v1877
    %v2118 = vmul.f32 %v2117, %v2116
    %v2119 = vmul.f32 0.5, %v2118
    %v2120 = vsub.f32 1.5, %v2119
    %v2121 = vmul.f32 %v2116, %v2120
    %vm2122 = vweird.f32 %v1877
    %vm2123 = vweird.f32 %v2116
    %vm2124 = vmor %vm2122, %vm2123
    %v2125 = vsel %vm2124, %v2116, %v2121
    %v2126 = vrsqrt.pop %v1878
    %v2127 = vmul.f32 %v2126, %v1878
    %v2128 = vmul.f32 %v2127, %v2126
    %v2129 = vmul.f32 0.5, %v2128
    %v2130 = vsub.f32 1.5, %v2129
    %v2131 = vmul.f32 %v2126, %v2130
    %vm2132 = vweird.f32 %v1878
    %vm2133 = vweird.f32 %v2126
    %vm2134 = vmor %vm2132, %vm2133
    %v2135 = vsel %vm2134, %v2126, %v2131
    %v2136 = vrsqrt.pop %v1879
    %v2137 = vmul.f32 %v2136, %v1879
    %v2138 = vmul.f32 %v2137, %v2136
    %v2139 = vmul.f32 0.5, %v2138
    %v2140 = vsub.f32 1.5, %v2139
    %v2141 = vmul.f32 %v2136, %v2140
    %vm2142 = vweird.f32 %v1879
    %vm2143 = vweird.f32 %v2136
    %vm2144 = vmor %vm2142, %vm2143
    %v2145 = vsel %vm2144, %v2136, %v2141
    %v2146 = vrsqrt.pop %v1880
    %v2147 = vmul.f32 %v2146, %v1880
    %v2148 = vmul.f32 %v2147, %v2146
    %v2149 = vmul.f32 0.5, %v2148
    %v2150 = vsub.f32 1.5, %v2149
    %v2151 = vmul.f32 %v2146, %v2150
    %vm2152 = vweird.f32 %v1880
    %vm2153 = vweird.f32 %v2146
    %vm2154 = vmor %vm2152, %vm2153
    %v2155 = vsel %vm2154, %v2146, %v2151
    %v2156 = vrsqrt.pop %v1881
    %v2157 = vmul.f32 %v2156, %v1881
    %v2158 = vmul.f32 %v2157, %v2156
    %v2159 = vmul.f32 0.5, %v2158
    %v2160 = vsub.f32 1.5, %v2159
    %v2161 = vmul.f32 %v2156, %v2160
    %vm2162 = vweird.f32 %v1881
    %vm2163 = vweird.f32 %v2156
    %vm2164 = vmor %vm2162, %vm2163
    %v2165 = vsel %vm2164, %v2156, %v2161
    %v2166 = vrsqrt.pop %v1882
    %v2167 = vmul.f32 %v2166, %v1882
    %v2168 = vmul.f32 %v2167, %v2166
    %v2169 = vmul.f32 0.5, %v2168
    %v2170 = vsub.f32 1.5, %v2169
    %v2171 = vmul.f32 %v2166, %v2170
    %vm2172 = vweird.f32 %v1882
    %vm2173 = vweird.f32 %v2166
    %vm2174 = vmor %vm2172, %vm2173
    %v2175 = vsel %vm2174, %v2166, %v2171
    %v2176 = vrsqrt.pop %v1883
    %v2177 = vmul.f32 %v2176, %v1883
    %v2178 = vmul.f32 %v2177, %v2176
    %v2179 = vmul.f32 0.5, %v2178
    %v2180 = vsub.f32 1.5, %v2179
    %v2181 = vmul.f32 %v2176, %v2180
    %vm2182 = vweird.f32 %v1883
    %vm2183 = vweird.f32 %v2176
    %vm2184 = vmor %vm2182, %vm2183
    %v2185 = vsel %vm2184, %v2176, %v2181
    %v2186 = vrsqrt.pop %v1884
    %v2187 = vmul.f32 %v2186, %v1884
    %v2188 = vmul.f32 %v2187, %v2186
    %v2189 = vmul.f32 0.5, %v2188
    %v2190 = vsub.f32 1.5, %v2189
    %v2191 = vmul.f32 %v2186, %v2190
    %vm2192 = vweird.f32 %v1884
    %vm2193 = vweird.f32 %v2186
    %vm2194 = vmor %vm2192, %vm2193
    %v2195 = vsel %vm2194, %v2186, %v2191
    %v2196 = vrsqrt.pop %v1885
    %v2197 = vmul.f32 %v2196, %v1885
    %v2198 = vmul.f32 %v2197, %v2196
    %v2199 = vmul.f32 0.5, %v2198
    %v2200 = vsub.f32 1.5, %v2199
    %v2201 = vmul.f32 %v2196, %v2200
    %vm2202 = vweird.f32 %v1885
    %vm2203 = vweird.f32 %v2196
    %vm2204 = vmor %vm2202, %vm2203
    %v2205 = vsel %vm2204, %v2196, %v2201
    %v2206 = vrsqrt.pop %v1886
    %v2207 = vmul.f32 %v2206, %v1886
    %v2208 = vmul.f32 %v2207, %v2206
    %v2209 = vmul.f32 0.5, %v2208
    %v2210 = vsub.f32 1.5, %v2209
    %v2211 = vmul.f32 %v2206, %v2210
    %vm2212 = vweird.f32 %v1886
    %vm2213 = vweird.f32 %v2206
    %vm2214 = vmor %vm2212, %vm2213
    %v2215 = vsel %vm2214, %v2206, %v2211
    %v2216 = vrsqrt.pop %v1887
    %v2217 = vmul.f32 %v2216, %v1887
    %v2218 = vmul.f32 %v2217, %v2216
    %v2219 = vmul.f32 0.5, %v2218
    %v2220 = vsub.f32 1.5, %v2219
    %v2221 = vmul.f32 %v2216, %v2220
    %vm2222 = vweird.f32 %v1887
    %vm2223 = vweird.f32 %v2216
    %vm2224 = vmor %vm2222, %vm2223
    %v2225 = vsel %vm2224, %v2216, %v2221
    %v2226 = vrsqrt.pop %v1888
    %v2227 = vmul.f32 %v2226, %v1888
    %v2228 = vmul.f32 %v2227, %v2226
    %v2229 = vmul.f32 0.5, %v2228
    %v2230 = vsub.f32 1.5, %v2229
    %v2231 = vmul.f32 %v2226, %v2230
    %vm2232 = vweird.f32 %v1888
    %vm2233 = vweird.f32 %v2226
    %vm2234 = vmor %vm2232, %vm2233
    %v2235 = vsel %vm2234, %v2226, %v2231
    %v2236 = vrsqrt.pop %v1889
    %v2237 = vmul.f32 %v2236, %v1889
    %v2238 = vmul.f32 %v2237, %v2236
    %v2239 = vmul.f32 0.5, %v2238
    %v2240 = vsub.f32 1.5, %v2239
    %v2241 = vmul.f32 %v2236, %v2240
    %vm2242 = vweird.f32 %v1889
    %vm2243 = vweird.f32 %v2236
    %vm2244 = vmor %vm2242, %vm2243
    %v2245 = vsel %vm2244, %v2236, %v2241
    %v2246 = vrsqrt.pop %v1890
    %v2247 = vmul.f32 %v2246, %v1890
    %v2248 = vmul.f32 %v2247, %v2246
    %v2249 = vmul.f32 0.5, %v2248
    %v2250 = vsub.f32 1.5, %v2249
    %v2251 = vmul.f32 %v2246, %v2250
    %vm2252 = vweird.f32 %v1890
    %vm2253 = vweird.f32 %v2246
    %vm2254 = vmor %vm2252, %vm2253
    %v2255 = vsel %vm2254, %v2246, %v2251
    %v2256 = vrsqrt.pop %v1891
    %v2257 = vmul.f32 %v2256, %v1891
    %v2258 = vmul.f32 %v2257, %v2256
    %v2259 = vmul.f32 0.5, %v2258
    %v2260 = vsub.f32 1.5, %v2259
    %v2261 = vmul.f32 %v2256, %v2260
    %vm2262 = vweird.f32 %v1891
    %vm2263 = vweird.f32 %v2256
    %vm2264 = vmor %vm2262, %vm2263
    %v2265 = vsel %vm2264, %v2256, %v2261
    %v2266 = vrsqrt.pop %v1892
    %v2267 = vmul.f32 %v2266, %v1892
    %v2268 = vmul.f32 %v2267, %v2266
    %v2269 = vmul.f32 0.5, %v2268
    %v2270 = vsub.f32 1.5, %v2269
    %v2271 = vmul.f32 %v2266, %v2270
    %vm2272 = vweird.f32 %v1892
    %vm2273 = vweird.f32 %v2266
    %vm2274 = vmor %vm2272, %vm2273
    %v2275 = vsel %vm2274, %v2266, %v2271
    %v2276 = vrsqrt.pop %v1893
    %v2277 = vmul.f32 %v2276, %v1893
    %v2278 = vmul.f32 %v2277, %v2276
    %v2279 = vmul.f32 0.5, %v2278
    %v2280 = vsub.f32 1.5, %v2279
    %v2281 = vmul.f32 %v2276, %v2280
    %vm2282 = vweird.f32 %v1893
    %vm2283 = vweird.f32 %v2276
    %vm2284 = vmor %vm2282, %vm2283
    %v2285 = vsel %vm2284, %v2276, %v2281
    %v2286 = vrsqrt.pop %v1894
    %v2287 = vmul.f32 %v2286, %v1894
    %v2288 = vmul.f32 %v2287, %v2286
    %v2289 = vmul.f32 0.5, %v2288
    %v2290 = vsub.f32 1.5, %v2289
    %v2291 = vmul.f32 %v2286, %v2290
    %vm2292 = vweird.f32 %v1894
    %vm2293 = vweird.f32 %v2286
    %vm2294 = vmor %vm2292, %vm2293
    %v2295 = vsel %vm2294, %v2286, %v2291
    %v2296 = vrsqrt.pop %v1895
    %v2297 = vmul.f32 %v2296, %v1895
    %v2298 = vmul.f32 %v2297, %v2296
    %v2299 = vmul.f32 0.5, %v2298
    %v2300 = vsub.f32 1.5, %v2299
    %v2301 = vmul.f32 %v2296, %v2300
    %vm2302 = vweird.f32 %v1895
    %vm2303 = vweird.f32 %v2296
    %vm2304 = vmor %vm2302, %vm2303
    %v2305 = vsel %vm2304, %v2296, %v2301
    %v2306 = vrsqrt.pop %v1896
    %v2307 = vmul.f32 %v2306, %v1896
    %v2308 = vmul.f32 %v2307, %v2306
    %v2309 = vmul.f32 0.5, %v2308
    %v2310 = vsub.f32 1.5, %v2309
    %v2311 = vmul.f32 %v2306, %v2310
    %vm2312 = vweird.f32 %v1896
    %vm2313 = vweird.f32 %v2306
    %vm2314 = vmor %vm2312, %vm2313
    %v2315 = vsel %vm2314, %v2306, %v2311
    %v2316 = vrsqrt.pop %v1897
    %v2317 = vmul.f32 %v2316, %v1897
    %v2318 = vmul.f32 %v2317, %v2316
    %v2319 = vmul.f32 0.5, %v2318
    %v2320 = vsub.f32 1.5, %v2319
    %v2321 = vmul.f32 %v2316, %v2320
    %vm2322 = vweird.f32 %v1897
    %vm2323 = vweird.f32 %v2316
    %vm2324 = vmor %vm2322, %vm2323
    %v2325 = vsel %vm2324, %v2316, %v2321
    %v2326 = vrsqrt.pop %v1898
    %v2327 = vmul.f32 %v2326, %v1898
    %v2328 = vmul.f32 %v2327, %v2326
    %v2329 = vmul.f32 0.5, %v2328
    %v2330 = vsub.f32 1.5, %v2329
    %v2331 = vmul.f32 %v2326, %v2330
    %vm2332 = vweird.f32 %v1898
    %vm2333 = vweird.f32 %v2326
    %vm2334 = vmor %vm2332, %vm2333
    %v2335 = vsel %vm2334, %v2326, %v2331
    %v2336 = vrsqrt.pop %v1899
    %v2337 = vmul.f32 %v2336, %v1899
    %v2338 = vmul.f32 %v2337, %v2336
    %v2339 = vmul.f32 0.5, %v2338
    %v2340 = vsub.f32 1.5, %v2339
    %v2341 = vmul.f32 %v2336, %v2340
    %vm2342 = vweird.f32 %v1899
    %vm2343 = vweird.f32 %v2336
    %vm2344 = vmor %vm2342, %vm2343
    %v2345 = vsel %vm2344, %v2336, %v2341
    %v2346 = vrsqrt.pop %v1900
    %v2347 = vmul.f32 %v2346, %v1900
    %v2348 = vmul.f32 %v2347, %v2346
    %v2349 = vmul.f32 0.5, %v2348
    %v2350 = vsub.f32 1.5, %v2349
    %v2351 = vmul.f32 %v2346, %v2350
    %vm2352 = vweird.f32 %v1900
    %vm2353 = vweird.f32 %v2346
    %vm2354 = vmor %vm2352, %vm2353
    %v2355 = vsel %vm2354, %v2346, %v2351
    %v2356 = vrsqrt.pop %v1901
    %v2357 = vmul.f32 %v2356, %v1901
    %v2358 = vmul.f32 %v2357, %v2356
    %v2359 = vmul.f32 0.5, %v2358
    %v2360 = vsub.f32 1.5, %v2359
    %v2361 = vmul.f32 %v2356, %v2360
    %vm2362 = vweird.f32 %v1901
    %vm2363 = vweird.f32 %v2356
    %vm2364 = vmor %vm2362, %vm2363
    %v2365 = vsel %vm2364, %v2356, %v2361
    %v2366 = vrsqrt.pop %v1902
    %v2367 = vmul.f32 %v2366, %v1902
    %v2368 = vmul.f32 %v2367, %v2366
    %v2369 = vmul.f32 0.5, %v2368
    %v2370 = vsub.f32 1.5, %v2369
    %v2371 = vmul.f32 %v2366, %v2370
    %vm2372 = vweird.f32 %v1902
    %vm2373 = vweird.f32 %v2366
    %vm2374 = vmor %vm2372, %vm2373
    %v2375 = vsel %vm2374, %v2366, %v2371
    %v2376 = vrsqrt.pop %v1903
    %v2377 = vmul.f32 %v2376, %v1903
    %v2378 = vmul.f32 %v2377, %v2376
    %v2379 = vmul.f32 0.5, %v2378
    %v2380 = vsub.f32 1.5, %v2379
    %v2381 = vmul.f32 %v2376, %v2380
    %vm2382 = vweird.f32 %v1903
    %vm2383 = vweird.f32 %v2376
    %vm2384 = vmor %vm2382, %vm2383
    %v2385 = vsel %vm2384, %v2376, %v2381
    %v2386 = vrsqrt.pop %v1904
    %v2387 = vmul.f32 %v2386, %v1904
    %v2388 = vmul.f32 %v2387, %v2386
    %v2389 = vmul.f32 0.5, %v2388
    %v2390 = vsub.f32 1.5, %v2389
    %v2391 = vmul.f32 %v2386, %v2390
    %vm2392 = vweird.f32 %v1904
    %vm2393 = vweird.f32 %v2386
    %vm2394 = vmor %vm2392, %vm2393
    %v2395 = vsel %vm2394, %v2386, %v2391
    %v2396 = vrsqrt.pop %v1905
    %v2397 = vmul.f32 %v2396, %v1905
    %v2398 = vmul.f32 %v2397, %v2396
    %v2399 = vmul.f32 0.5, %v2398
    %v2400 = vsub.f32 1.5, %v2399
    %v2401 = vmul.f32 %v2396, %v2400
    %vm2402 = vweird.f32 %v1905
    %vm2403 = vweird.f32 %v2396
    %vm2404 = vmor %vm2402, %vm2403
    %v2405 = vsel %vm2404, %v2396, %v2401
    %v2406 = vld [vmem:[%s3] sm:$0xff]
    %v2407 = vld [vmem:[%s3 + $0x8] sm:$0xff]
    %v2408 = vld [vmem:[%s3 + $0x10] sm:$0xff]
    %v2409 = vld [vmem:[%s3 + $0x18] sm:$0xff]
    %v2410 = vld [vmem:[%s3 + $0x20] sm:$0xff]
    %v2411 = vld [vmem:[%s3 + $0x28] sm:$0xff]
    %v2412 = vld [vmem:[%s3 + $0x30] sm:$0xff]
    %v2413 = vld [vmem:[%s3 + $0x38] sm:$0xff]
    %v2414 = vld [vmem:[%s3 + $0x40] sm:$0xff]
    %v2415 = vld [vmem:[%s3 + $0x48] sm:$0xff]
    %v2416 = vld [vmem:[%s3 + $0x50] sm:$0xff]
    %v2417 = vld [vmem:[%s3 + $0x58] sm:$0xff]
    %v2418 = vld [vmem:[%s3 + $0x60] sm:$0xff]
    %v2419 = vld [vmem:[%s3 + $0x68] sm:$0xff]
    %v2420 = vld [vmem:[%s3 + $0x70] sm:$0xff]
    %v2421 = vld [vmem:[%s3 + $0x78] sm:$0xff]
    %v2422 = vld [vmem:[%s3 + $0x80] sm:$0xff]
    %v2423 = vld [vmem:[%s3 + $0x88] sm:$0xff]
    %v2424 = vld [vmem:[%s3 + $0x90] sm:$0xff]
    %v2425 = vld [vmem:[%s3 + $0x98] sm:$0xff]
    %v2426 = vld [vmem:[%s3 + $0xa0] sm:$0xff]
    %v2427 = vld [vmem:[%s3 + $0xa8] sm:$0xff]
    %v2428 = vld [vmem:[%s3 + $0xb0] sm:$0xff]
    %v2429 = vld [vmem:[%s3 + $0xb8] sm:$0xff]
    %v2430 = vld [vmem:[%s3 + $0xc0] sm:$0xff]
    %v2431 = vld [vmem:[%s3 + $0xc8] sm:$0xff]
    %v2432 = vld [vmem:[%s3 + $0xd0] sm:$0xff]
    %v2433 = vld [vmem:[%s3 + $0xd8] sm:$0xff]
    %v2434 = vld [vmem:[%s3 + $0xe0] sm:$0xff]
    %v2435 = vld [vmem:[%s3 + $0xe8] sm:$0xff]
    %v2436 = vld [vmem:[%s3 + $0xf0] sm:$0xff]
    %v2437 = vld [vmem:[%s3 + $0xf8] sm:$0xff]
    %v2438 = vld [vmem:[%s3 + $0x100] sm:$0xff]
    %v2439 = vld [vmem:[%s3 + $0x108] sm:$0xff]
    %v2440 = vld [vmem:[%s3 + $0x110] sm:$0xff]
    %v2441 = vld [vmem:[%s3 + $0x118] sm:$0xff]
    %v2442 = vld [vmem:[%s3 + $0x120] sm:$0xff]
    %v2443 = vld [vmem:[%s3 + $0x128] sm:$0xff]
    %v2444 = vld [vmem:[%s3 + $0x130] sm:$0xff]
    %v2445 = vld [vmem:[%s3 + $0x138] sm:$0xff]
    %v2446 = vld [vmem:[%s3 + $0x140] sm:$0xff]
    %v2447 = vld [vmem:[%s3 + $0x148] sm:$0xff]
    %v2448 = vld [vmem:[%s3 + $0x150] sm:$0xff]
    %v2449 = vld [vmem:[%s3 + $0x158] sm:$0xff]
    %v2450 = vld [vmem:[%s3 + $0x160] sm:$0xff]
    %v2451 = vld [vmem:[%s3 + $0x168] sm:$0xff]
    %v2452 = vld [vmem:[%s3 + $0x170] sm:$0xff]
    %v2453 = vld [vmem:[%s3 + $0x178] sm:$0xff]
    %v2454 = vld [vmem:[%s3 + $0x180] sm:$0xff]
    %v2455 = vld [vmem:[%s3 + $0x188] sm:$0xff]
    %v2456 = vmul.f32 %v1915, %v2406
    %v2457 = vmul.f32 %v1925, %v2407
    %v2458 = vmul.f32 %v1935, %v2408
    %v2459 = vmul.f32 %v1945, %v2409
    %v2460 = vmul.f32 %v1955, %v2410
    %v2461 = vmul.f32 %v1965, %v2411
    %v2462 = vmul.f32 %v1975, %v2412
    %v2463 = vmul.f32 %v1985, %v2413
    %v2464 = vmul.f32 %v1995, %v2414
    %v2465 = vmul.f32 %v2005, %v2415
    %v2466 = vmul.f32 %v2015, %v2416
    %v2467 = vmul.f32 %v2025, %v2417
    %v2468 = vmul.f32 %v2035, %v2418
    %v2469 = vmul.f32 %v2045, %v2419
    %v2470 = vmul.f32 %v2055, %v2420
    %v2471 = vmul.f32 %v2065, %v2421
    %v2472 = vmul.f32 %v2075, %v2422
    %v2473 = vmul.f32 %v2085, %v2423
    %v2474 = vmul.f32 %v2095, %v2424
    %v2475 = vmul.f32 %v2105, %v2425
    %v2476 = vmul.f32 %v2115, %v2426
    %v2477 = vmul.f32 %v2125, %v2427
    %v2478 = vmul.f32 %v2135, %v2428
    %v2479 = vmul.f32 %v2145, %v2429
    %v2480 = vmul.f32 %v2155, %v2430
    %v2481 = vmul.f32 %v2165, %v2431
    %v2482 = vmul.f32 %v2175, %v2432
    %v2483 = vmul.f32 %v2185, %v2433
    %v2484 = vmul.f32 %v2195, %v2434
    %v2485 = vmul.f32 %v2205, %v2435
    %v2486 = vmul.f32 %v2215, %v2436
    %v2487 = vmul.f32 %v2225, %v2437
    %v2488 = vmul.f32 %v2235, %v2438
    %v2489 = vmul.f32 %v2245, %v2439
    %v2490 = vmul.f32 %v2255, %v2440
    %v2491 = vmul.f32 %v2265, %v2441
    %v2492 = vmul.f32 %v2275, %v2442
    %v2493 = vmul.f32 %v2285, %v2443
    %v2494 = vmul.f32 %v2295, %v2444
    %v2495 = vmul.f32 %v2305, %v2445
    %v2496 = vmul.f32 %v2315, %v2446
    %v2497 = vmul.f32 %v2325, %v2447
    %v2498 = vmul.f32 %v2335, %v2448
    %v2499 = vmul.f32 %v2345, %v2449
    %v2500 = vmul.f32 %v2355, %v2450
    %v2501 = vmul.f32 %v2365, %v2451
    %v2502 = vmul.f32 %v2375, %v2452
    %v2503 = vmul.f32 %v2385, %v2453
    %v2504 = vmul.f32 %v2395, %v2454
    %v2505 = vmul.f32 %v2405, %v2455
    %v2506 = vsub.f32 %v1106, %v1606
    %v2507 = vsub.f32 %v1109, %v1607
    %v2508 = vsub.f32 %v1112, %v1608
    %v2509 = vsub.f32 %v1115, %v1609
    %v2510 = vsub.f32 %v1118, %v1610
    %v2511 = vsub.f32 %v1121, %v1611
    %v2512 = vsub.f32 %v1124, %v1612
    %v2513 = vsub.f32 %v1127, %v1613
    %v2514 = vsub.f32 %v1130, %v1614
    %v2515 = vsub.f32 %v1133, %v1615
    %v2516 = vsub.f32 %v1136, %v1616
    %v2517 = vsub.f32 %v1139, %v1617
    %v2518 = vsub.f32 %v1142, %v1618
    %v2519 = vsub.f32 %v1145, %v1619
    %v2520 = vsub.f32 %v1148, %v1620
    %v2521 = vsub.f32 %v1151, %v1621
    %v2522 = vsub.f32 %v1154, %v1622
    %v2523 = vsub.f32 %v1157, %v1623
    %v2524 = vsub.f32 %v1160, %v1624
    %v2525 = vsub.f32 %v1163, %v1625
    %v2526 = vsub.f32 %v1166, %v1626
    %v2527 = vsub.f32 %v1169, %v1627
    %v2528 = vsub.f32 %v1172, %v1628
    %v2529 = vsub.f32 %v1175, %v1629
    %v2530 = vsub.f32 %v1178, %v1630
    %v2531 = vsub.f32 %v1181, %v1631
    %v2532 = vsub.f32 %v1184, %v1632
    %v2533 = vsub.f32 %v1187, %v1633
    %v2534 = vsub.f32 %v1190, %v1634
    %v2535 = vsub.f32 %v1193, %v1635
    %v2536 = vsub.f32 %v1196, %v1636
    %v2537 = vsub.f32 %v1199, %v1637
    %v2538 = vsub.f32 %v1202, %v1638
    %v2539 = vsub.f32 %v1205, %v1639
    %v2540 = vsub.f32 %v1208, %v1640
    %v2541 = vsub.f32 %v1211, %v1641
    %v2542 = vsub.f32 %v1214, %v1642
    %v2543 = vsub.f32 %v1217, %v1643
    %v2544 = vsub.f32 %v1220, %v1644
    %v2545 = vsub.f32 %v1223, %v1645
    %v2546 = vsub.f32 %v1226, %v1646
    %v2547 = vsub.f32 %v1229, %v1647
    %v2548 = vsub.f32 %v1232, %v1648
    %v2549 = vsub.f32 %v1235, %v1649
    %v2550 = vsub.f32 %v1238, %v1650
    %v2551 = vsub.f32 %v1241, %v1651
    %v2552 = vsub.f32 %v1244, %v1652
    %v2553 = vsub.f32 %v1247, %v1653
    %v2554 = vsub.f32 %v1250, %v1654
    %v2555 = vsub.f32 %v1253, %v1655
    %2557 = vset.pattern.permute.xlu0 0
    %2558 = vperm.xlu0 %2557, %v2456
    %v2559 = vpop.permute.xlu0 %2558
    %2562 = vset.pattern.permute.xlu0 0
    %2563 = vperm.xlu0 %2562, %v2457
    %v2564 = vpop.permute.xlu0 %2563
    %2567 = vset.pattern.permute.xlu0 0
    %2568 = vperm.xlu0 %2567, %v2458
    %v2569 = vpop.permute.xlu0 %2568
    %2572 = vset.pattern.permute.xlu0 0
    %2573 = vperm.xlu0 %2572, %v2459
    %v2574 = vpop.permute.xlu0 %2573
    %2577 = vset.pattern.permute.xlu0 0
    %2578 = vperm.xlu0 %2577, %v2460
    %v2579 = vpop.permute.xlu0 %2578
    %2582 = vset.pattern.permute.xlu0 0
    %2583 = vperm.xlu0 %2582, %v2461
    %v2584 = vpop.permute.xlu0 %2583
    %2587 = vset.pattern.permute.xlu0 0
    %2588 = vperm.xlu0 %2587, %v2462
    %v2589 = vpop.permute.xlu0 %2588
    %2592 = vset.pattern.permute.xlu0 0
    %2593 = vperm.xlu0 %2592, %v2463
    %v2594 = vpop.permute.xlu0 %2593
    %2597 = vset.pattern.permute.xlu0 0
    %2598 = vperm.xlu0 %2597, %v2464
    %v2599 = vpop.permute.xlu0 %2598
    %2602 = vset.pattern.permute.xlu0 0
    %2603 = vperm.xlu0 %2602, %v2465
    %v2604 = vpop.permute.xlu0 %2603
    %2607 = vset.pattern.permute.xlu0 0
    %2608 = vperm.xlu0 %2607, %v2466
    %v2609 = vpop.permute.xlu0 %2608
    %2612 = vset.pattern.permute.xlu0 0
    %2613 = vperm.xlu0 %2612, %v2467
    %v2614 = vpop.permute.xlu0 %2613
    %2617 = vset.pattern.permute.xlu0 0
    %2618 = vperm.xlu0 %2617, %v2468
    %v2619 = vpop.permute.xlu0 %2618
    %2622 = vset.pattern.permute.xlu0 0
    %2623 = vperm.xlu0 %2622, %v2469
    %v2624 = vpop.permute.xlu0 %2623
    %2627 = vset.pattern.permute.xlu0 0
    %2628 = vperm.xlu0 %2627, %v2470
    %v2629 = vpop.permute.xlu0 %2628
    %2632 = vset.pattern.permute.xlu0 0
    %2633 = vperm.xlu0 %2632, %v2471
    %v2634 = vpop.permute.xlu0 %2633
    %2637 = vset.pattern.permute.xlu0 0
    %2638 = vperm.xlu0 %2637, %v2472
    %v2639 = vpop.permute.xlu0 %2638
    %2642 = vset.pattern.permute.xlu0 0
    %2643 = vperm.xlu0 %2642, %v2473
    %v2644 = vpop.permute.xlu0 %2643
    %2647 = vset.pattern.permute.xlu0 0
    %2648 = vperm.xlu0 %2647, %v2474
    %v2649 = vpop.permute.xlu0 %2648
    %2652 = vset.pattern.permute.xlu0 0
    %2653 = vperm.xlu0 %2652, %v2475
    %v2654 = vpop.permute.xlu0 %2653
    %2657 = vset.pattern.permute.xlu0 0
    %2658 = vperm.xlu0 %2657, %v2476
    %v2659 = vpop.permute.xlu0 %2658
    %2662 = vset.pattern.permute.xlu0 0
    %2663 = vperm.xlu0 %2662, %v2477
    %v2664 = vpop.permute.xlu0 %2663
    %2667 = vset.pattern.permute.xlu0 0
    %2668 = vperm.xlu0 %2667, %v2478
    %v2669 = vpop.permute.xlu0 %2668
    %2672 = vset.pattern.permute.xlu0 0
    %2673 = vperm.xlu0 %2672, %v2479
    %v2674 = vpop.permute.xlu0 %2673
    %2677 = vset.pattern.permute.xlu0 0
    %2678 = vperm.xlu0 %2677, %v2480
    %v2679 = vpop.permute.xlu0 %2678
    %2682 = vset.pattern.permute.xlu0 0
    %2683 = vperm.xlu0 %2682, %v2481
    %v2684 = vpop.permute.xlu0 %2683
    %2687 = vset.pattern.permute.xlu0 0
    %2688 = vperm.xlu0 %2687, %v2482
    %v2689 = vpop.permute.xlu0 %2688
    %2692 = vset.pattern.permute.xlu0 0
    %2693 = vperm.xlu0 %2692, %v2483
    %v2694 = vpop.permute.xlu0 %2693
    %2697 = vset.pattern.permute.xlu0 0
    %2698 = vperm.xlu0 %2697, %v2484
    %v2699 = vpop.permute.xlu0 %2698
    %2702 = vset.pattern.permute.xlu0 0
    %2703 = vperm.xlu0 %2702, %v2485
    %v2704 = vpop.permute.xlu0 %2703
    %2707 = vset.pattern.permute.xlu0 0
    %2708 = vperm.xlu0 %2707, %v2486
    %v2709 = vpop.permute.xlu0 %2708
    %2712 = vset.pattern.permute.xlu0 0
    %2713 = vperm.xlu0 %2712, %v2487
    %v2714 = vpop.permute.xlu0 %2713
    %2717 = vset.pattern.permute.xlu0 0
    %2718 = vperm.xlu0 %2717, %v2488
    %v2719 = vpop.permute.xlu0 %2718
    %2722 = vset.pattern.permute.xlu0 0
    %2723 = vperm.xlu0 %2722, %v2489
    %v2724 = vpop.permute.xlu0 %2723
    %2727 = vset.pattern.permute.xlu0 0
    %2728 = vperm.xlu0 %2727, %v2490
    %v2729 = vpop.permute.xlu0 %2728
    %2732 = vset.pattern.permute.xlu0 0
    %2733 = vperm.xlu0 %2732, %v2491
    %v2734 = vpop.permute.xlu0 %2733
    %2737 = vset.pattern.permute.xlu0 0
    %2738 = vperm.xlu0 %2737, %v2492
    %v2739 = vpop.permute.xlu0 %2738
    %2742 = vset.pattern.permute.xlu0 0
    %2743 = vperm.xlu0 %2742, %v2493
    %v2744 = vpop.permute.xlu0 %2743
    %2747 = vset.pattern.permute.xlu0 0
    %2748 = vperm.xlu0 %2747, %v2494
    %v2749 = vpop.permute.xlu0 %2748
    %2752 = vset.pattern.permute.xlu0 0
    %2753 = vperm.xlu0 %2752, %v2495
    %v2754 = vpop.permute.xlu0 %2753
    %2757 = vset.pattern.permute.xlu0 0
    %2758 = vperm.xlu0 %2757, %v2496
    %v2759 = vpop.permute.xlu0 %2758
    %2762 = vset.pattern.permute.xlu0 0
    %2763 = vperm.xlu0 %2762, %v2497
    %v2764 = vpop.permute.xlu0 %2763
    %2767 = vset.pattern.permute.xlu0 0
    %2768 = vperm.xlu0 %2767, %v2498
    %v2769 = vpop.permute.xlu0 %2768
    %2772 = vset.pattern.permute.xlu0 0
    %2773 = vperm.xlu0 %2772, %v2499
    %v2774 = vpop.permute.xlu0 %2773
    %2777 = vset.pattern.permute.xlu0 0
    %2778 = vperm.xlu0 %2777, %v2500
    %v2779 = vpop.permute.xlu0 %2778
    %2782 = vset.pattern.permute.xlu0 0
    %2783 = vperm.xlu0 %2782, %v2501
    %v2784 = vpop.permute.xlu0 %2783
    %2787 = vset.pattern.permute.xlu0 0
    %2788 = vperm.xlu0 %2787, %v2502
    %v2789 = vpop.permute.xlu0 %2788
    %2792 = vset.pattern.permute.xlu0 0
    %2793 = vperm.xlu0 %2792, %v2503
    %v2794 = vpop.permute.xlu0 %2793
    %2797 = vset.pattern.permute.xlu0 0
    %2798 = vperm.xlu0 %2797, %v2504
    %v2799 = vpop.permute.xlu0 %2798
    %2802 = vset.pattern.permute.xlu0 0
    %2803 = vperm.xlu0 %2802, %v2505
    %v2804 = vpop.permute.xlu0 %2803
    %v2806 = vmul.f32 %v2506, %v2559
    %v2807 = vmul.f32 %v2507, %v2564
    %v2808 = vmul.f32 %v2508, %v2569
    %v2809 = vmul.f32 %v2509, %v2574
    %v2810 = vmul.f32 %v2510, %v2579
    %v2811 = vmul.f32 %v2511, %v2584
    %v2812 = vmul.f32 %v2512, %v2589
    %v2813 = vmul.f32 %v2513, %v2594
    %v2814 = vmul.f32 %v2514, %v2599
    %v2815 = vmul.f32 %v2515, %v2604
    %v2816 = vmul.f32 %v2516, %v2609
    %v2817 = vmul.f32 %v2517, %v2614
    %v2818 = vmul.f32 %v2518, %v2619
    %v2819 = vmul.f32 %v2519, %v2624
    %v2820 = vmul.f32 %v2520, %v2629
    %v2821 = vmul.f32 %v2521, %v2634
    %v2822 = vmul.f32 %v2522, %v2639
    %v2823 = vmul.f32 %v2523, %v2644
    %v2824 = vmul.f32 %v2524, %v2649
    %v2825 = vmul.f32 %v2525, %v2654
    %v2826 = vmul.f32 %v2526, %v2659
    %v2827 = vmul.f32 %v2527, %v2664
    %v2828 = vmul.f32 %v2528, %v2669
    %v2829 = vmul.f32 %v2529, %v2674
    %v2830 = vmul.f32 %v2530, %v2679
    %v2831 = vmul.f32 %v2531, %v2684
    %v2832 = vmul.f32 %v2532, %v2689
    %v2833 = vmul.f32 %v2533, %v2694
    %v2834 = vmul.f32 %v2534, %v2699
    %v2835 = vmul.f32 %v2535, %v2704
    %v2836 = vmul.f32 %v2536, %v2709
    %v2837 = vmul.f32 %v2537, %v2714
    %v2838 = vmul.f32 %v2538, %v2719
    %v2839 = vmul.f32 %v2539, %v2724
    %v2840 = vmul.f32 %v2540, %v2729
    %v2841 = vmul.f32 %v2541, %v2734
    %v2842 = vmul.f32 %v2542, %v2739
    %v2843 = vmul.f32 %v2543, %v2744
    %v2844 = vmul.f32 %v2544, %v2749
    %v2845 = vmul.f32 %v2545, %v2754
    %v2846 = vmul.f32 %v2546, %v2759
    %v2847 = vmul.f32 %v2547, %v2764
    %v2848 = vmul.f32 %v2548, %v2769
    %v2849 = vmul.f32 %v2549, %v2774
    %v2850 = vmul.f32 %v2550, %v2779
    %v2851 = vmul.f32 %v2551, %v2784
    %v2852 = vmul.f32 %v2552, %v2789
    %v2853 = vmul.f32 %v2553, %v2794
    %v2854 = vmul.f32 %v2554, %v2799
    %v2855 = vmul.f32 %v2555, %v2804
    %v2856 = vld [vmem:[%s4] sm:$0xff]
    %v2857 = vld [vmem:[%s4 + $0x8] sm:$0xff]
    %v2858 = vld [vmem:[%s4 + $0x10] sm:$0xff]
    %v2859 = vld [vmem:[%s4 + $0x18] sm:$0xff]
    %v2860 = vld [vmem:[%s4 + $0x20] sm:$0xff]
    %v2861 = vld [vmem:[%s4 + $0x28] sm:$0xff]
    %v2862 = vld [vmem:[%s4 + $0x30] sm:$0xff]
    %v2863 = vld [vmem:[%s4 + $0x38] sm:$0xff]
    %v2864 = vld [vmem:[%s4 + $0x40] sm:$0xff]
    %v2865 = vld [vmem:[%s4 + $0x48] sm:$0xff]
    %v2866 = vld [vmem:[%s4 + $0x50] sm:$0xff]
    %v2867 = vld [vmem:[%s4 + $0x58] sm:$0xff]
    %v2868 = vld [vmem:[%s4 + $0x60] sm:$0xff]
    %v2869 = vld [vmem:[%s4 + $0x68] sm:$0xff]
    %v2870 = vld [vmem:[%s4 + $0x70] sm:$0xff]
    %v2871 = vld [vmem:[%s4 + $0x78] sm:$0xff]
    %v2872 = vld [vmem:[%s4 + $0x80] sm:$0xff]
    %v2873 = vld [vmem:[%s4 + $0x88] sm:$0xff]
    %v2874 = vld [vmem:[%s4 + $0x90] sm:$0xff]
    %v2875 = vld [vmem:[%s4 + $0x98] sm:$0xff]
    %v2876 = vld [vmem:[%s4 + $0xa0] sm:$0xff]
    %v2877 = vld [vmem:[%s4 + $0xa8] sm:$0xff]
    %v2878 = vld [vmem:[%s4 + $0xb0] sm:$0xff]
    %v2879 = vld [vmem:[%s4 + $0xb8] sm:$0xff]
    %v2880 = vld [vmem:[%s4 + $0xc0] sm:$0xff]
    %v2881 = vld [vmem:[%s4 + $0xc8] sm:$0xff]
    %v2882 = vld [vmem:[%s4 + $0xd0] sm:$0xff]
    %v2883 = vld [vmem:[%s4 + $0xd8] sm:$0xff]
    %v2884 = vld [vmem:[%s4 + $0xe0] sm:$0xff]
    %v2885 = vld [vmem:[%s4 + $0xe8] sm:$0xff]
    %v2886 = vld [vmem:[%s4 + $0xf0] sm:$0xff]
    %v2887 = vld [vmem:[%s4 + $0xf8] sm:$0xff]
    %v2888 = vld [vmem:[%s4 + $0x100] sm:$0xff]
    %v2889 = vld [vmem:[%s4 + $0x108] sm:$0xff]
    %v2890 = vld [vmem:[%s4 + $0x110] sm:$0xff]
    %v2891 = vld [vmem:[%s4 + $0x118] sm:$0xff]
    %v2892 = vld [vmem:[%s4 + $0x120] sm:$0xff]
    %v2893 = vld [vmem:[%s4 + $0x128] sm:$0xff]
    %v2894 = vld [vmem:[%s4 + $0x130] sm:$0xff]
    %v2895 = vld [vmem:[%s4 + $0x138] sm:$0xff]
    %v2896 = vld [vmem:[%s4 + $0x140] sm:$0xff]
    %v2897 = vld [vmem:[%s4 + $0x148] sm:$0xff]
    %v2898 = vld [vmem:[%s4 + $0x150] sm:$0xff]
    %v2899 = vld [vmem:[%s4 + $0x158] sm:$0xff]
    %v2900 = vld [vmem:[%s4 + $0x160] sm:$0xff]
    %v2901 = vld [vmem:[%s4 + $0x168] sm:$0xff]
    %v2902 = vld [vmem:[%s4 + $0x170] sm:$0xff]
    %v2903 = vld [vmem:[%s4 + $0x178] sm:$0xff]
    %v2904 = vld [vmem:[%s4 + $0x180] sm:$0xff]
    %v2905 = vld [vmem:[%s4 + $0x188] sm:$0xff]
    %2907 = vset.pattern.permute.xlu0 0
    %2908 = vperm.xlu0 %2907, %v2856
    %v2909 = vpop.permute.xlu0 %2908
    %2912 = vset.pattern.permute.xlu0 0
    %2913 = vperm.xlu0 %2912, %v2857
    %v2914 = vpop.permute.xlu0 %2913
    %2917 = vset.pattern.permute.xlu0 0
    %2918 = vperm.xlu0 %2917, %v2858
    %v2919 = vpop.permute.xlu0 %2918
    %2922 = vset.pattern.permute.xlu0 0
    %2923 = vperm.xlu0 %2922, %v2859
    %v2924 = vpop.permute.xlu0 %2923
    %2927 = vset.pattern.permute.xlu0 0
    %2928 = vperm.xlu0 %2927, %v2860
    %v2929 = vpop.permute.xlu0 %2928
    %2932 = vset.pattern.permute.xlu0 0
    %2933 = vperm.xlu0 %2932, %v2861
    %v2934 = vpop.permute.xlu0 %2933
    %2937 = vset.pattern.permute.xlu0 0
    %2938 = vperm.xlu0 %2937, %v2862
    %v2939 = vpop.permute.xlu0 %2938
    %2942 = vset.pattern.permute.xlu0 0
    %2943 = vperm.xlu0 %2942, %v2863
    %v2944 = vpop.permute.xlu0 %2943
    %2947 = vset.pattern.permute.xlu0 0
    %2948 = vperm.xlu0 %2947, %v2864
    %v2949 = vpop.permute.xlu0 %2948
    %2952 = vset.pattern.permute.xlu0 0
    %2953 = vperm.xlu0 %2952, %v2865
    %v2954 = vpop.permute.xlu0 %2953
    %2957 = vset.pattern.permute.xlu0 0
    %2958 = vperm.xlu0 %2957, %v2866
    %v2959 = vpop.permute.xlu0 %2958
    %2962 = vset.pattern.permute.xlu0 0
    %2963 = vperm.xlu0 %2962, %v2867
    %v2964 = vpop.permute.xlu0 %2963
    %2967 = vset.pattern.permute.xlu0 0
    %2968 = vperm.xlu0 %2967, %v2868
    %v2969 = vpop.permute.xlu0 %2968
    %2972 = vset.pattern.permute.xlu0 0
    %2973 = vperm.xlu0 %2972, %v2869
    %v2974 = vpop.permute.xlu0 %2973
    %2977 = vset.pattern.permute.xlu0 0
    %2978 = vperm.xlu0 %2977, %v2870
    %v2979 = vpop.permute.xlu0 %2978
    %2982 = vset.pattern.permute.xlu0 0
    %2983 = vperm.xlu0 %2982, %v2871
    %v2984 = vpop.permute.xlu0 %2983
    %2987 = vset.pattern.permute.xlu0 0
    %2988 = vperm.xlu0 %2987, %v2872
    %v2989 = vpop.permute.xlu0 %2988
    %2992 = vset.pattern.permute.xlu0 0
    %2993 = vperm.xlu0 %2992, %v2873
    %v2994 = vpop.permute.xlu0 %2993
    %2997 = vset.pattern.permute.xlu0 0
    %2998 = vperm.xlu0 %2997, %v2874
    %v2999 = vpop.permute.xlu0 %2998
    %3002 = vset.pattern.permute.xlu0 0
    %3003 = vperm.xlu0 %3002, %v2875
    %v3004 = vpop.permute.xlu0 %3003
    %3007 = vset.pattern.permute.xlu0 0
    %3008 = vperm.xlu0 %3007, %v2876
    %v3009 = vpop.permute.xlu0 %3008
    %3012 = vset.pattern.permute.xlu0 0
    %3013 = vperm.xlu0 %3012, %v2877
    %v3014 = vpop.permute.xlu0 %3013
    %3017 = vset.pattern.permute.xlu0 0
    %3018 = vperm.xlu0 %3017, %v2878
    %v3019 = vpop.permute.xlu0 %3018
    %3022 = vset.pattern.permute.xlu0 0
    %3023 = vperm.xlu0 %3022, %v2879
    %v3024 = vpop.permute.xlu0 %3023
    %3027 = vset.pattern.permute.xlu0 0
    %3028 = vperm.xlu0 %3027, %v2880
    %v3029 = vpop.permute.xlu0 %3028
    %3032 = vset.pattern.permute.xlu0 0
    %3033 = vperm.xlu0 %3032, %v2881
    %v3034 = vpop.permute.xlu0 %3033
    %3037 = vset.pattern.permute.xlu0 0
    %3038 = vperm.xlu0 %3037, %v2882
    %v3039 = vpop.permute.xlu0 %3038
    %3042 = vset.pattern.permute.xlu0 0
    %3043 = vperm.xlu0 %3042, %v2883
    %v3044 = vpop.permute.xlu0 %3043
    %3047 = vset.pattern.permute.xlu0 0
    %3048 = vperm.xlu0 %3047, %v2884
    %v3049 = vpop.permute.xlu0 %3048
    %3052 = vset.pattern.permute.xlu0 0
    %3053 = vperm.xlu0 %3052, %v2885
    %v3054 = vpop.permute.xlu0 %3053
    %3057 = vset.pattern.permute.xlu0 0
    %3058 = vperm.xlu0 %3057, %v2886
    %v3059 = vpop.permute.xlu0 %3058
    %3062 = vset.pattern.permute.xlu0 0
    %3063 = vperm.xlu0 %3062, %v2887
    %v3064 = vpop.permute.xlu0 %3063
    %3067 = vset.pattern.permute.xlu0 0
    %3068 = vperm.xlu0 %3067, %v2888
    %v3069 = vpop.permute.xlu0 %3068
    %3072 = vset.pattern.permute.xlu0 0
    %3073 = vperm.xlu0 %3072, %v2889
    %v3074 = vpop.permute.xlu0 %3073
    %3077 = vset.pattern.permute.xlu0 0
    %3078 = vperm.xlu0 %3077, %v2890
    %v3079 = vpop.permute.xlu0 %3078
    %3082 = vset.pattern.permute.xlu0 0
    %3083 = vperm.xlu0 %3082, %v2891
    %v3084 = vpop.permute.xlu0 %3083
    %3087 = vset.pattern.permute.xlu0 0
    %3088 = vperm.xlu0 %3087, %v2892
    %v3089 = vpop.permute.xlu0 %3088
    %3092 = vset.pattern.permute.xlu0 0
    %3093 = vperm.xlu0 %3092, %v2893
    %v3094 = vpop.permute.xlu0 %3093
    %3097 = vset.pattern.permute.xlu0 0
    %3098 = vperm.xlu0 %3097, %v2894
    %v3099 = vpop.permute.xlu0 %3098
    %3102 = vset.pattern.permute.xlu0 0
    %3103 = vperm.xlu0 %3102, %v2895
    %v3104 = vpop.permute.xlu0 %3103
    %3107 = vset.pattern.permute.xlu0 0
    %3108 = vperm.xlu0 %3107, %v2896
    %v3109 = vpop.permute.xlu0 %3108
    %3112 = vset.pattern.permute.xlu0 0
    %3113 = vperm.xlu0 %3112, %v2897
    %v3114 = vpop.permute.xlu0 %3113
    %3117 = vset.pattern.permute.xlu0 0
    %3118 = vperm.xlu0 %3117, %v2898
    %v3119 = vpop.permute.xlu0 %3118
    %3122 = vset.pattern.permute.xlu0 0
    %3123 = vperm.xlu0 %3122, %v2899
    %v3124 = vpop.permute.xlu0 %3123
    %3127 = vset.pattern.permute.xlu0 0
    %3128 = vperm.xlu0 %3127, %v2900
    %v3129 = vpop.permute.xlu0 %3128
    %3132 = vset.pattern.permute.xlu0 0
    %3133 = vperm.xlu0 %3132, %v2901
    %v3134 = vpop.permute.xlu0 %3133
    %3137 = vset.pattern.permute.xlu0 0
    %3138 = vperm.xlu0 %3137, %v2902
    %v3139 = vpop.permute.xlu0 %3138
    %3142 = vset.pattern.permute.xlu0 0
    %3143 = vperm.xlu0 %3142, %v2903
    %v3144 = vpop.permute.xlu0 %3143
    %3147 = vset.pattern.permute.xlu0 0
    %3148 = vperm.xlu0 %3147, %v2904
    %v3149 = vpop.permute.xlu0 %3148
    %3152 = vset.pattern.permute.xlu0 0
    %3153 = vperm.xlu0 %3152, %v2905
    %v3154 = vpop.permute.xlu0 %3153
    %v3156 = vadd.f32 %v2806, %v2909
    %v3157 = vadd.f32 %v2807, %v2914
    %v3158 = vadd.f32 %v2808, %v2919
    %v3159 = vadd.f32 %v2809, %v2924
    %v3160 = vadd.f32 %v2810, %v2929
    %v3161 = vadd.f32 %v2811, %v2934
    %v3162 = vadd.f32 %v2812, %v2939
    %v3163 = vadd.f32 %v2813, %v2944
    %v3164 = vadd.f32 %v2814, %v2949
    %v3165 = vadd.f32 %v2815, %v2954
    %v3166 = vadd.f32 %v2816, %v2959
    %v3167 = vadd.f32 %v2817, %v2964
    %v3168 = vadd.f32 %v2818, %v2969
    %v3169 = vadd.f32 %v2819, %v2974
    %v3170 = vadd.f32 %v2820, %v2979
    %v3171 = vadd.f32 %v2821, %v2984
    %v3172 = vadd.f32 %v2822, %v2989
    %v3173 = vadd.f32 %v2823, %v2994
    %v3174 = vadd.f32 %v2824, %v2999
    %v3175 = vadd.f32 %v2825, %v3004
    %v3176 = vadd.f32 %v2826, %v3009
    %v3177 = vadd.f32 %v2827, %v3014
    %v3178 = vadd.f32 %v2828, %v3019
    %v3179 = vadd.f32 %v2829, %v3024
    %v3180 = vadd.f32 %v2830, %v3029
    %v3181 = vadd.f32 %v2831, %v3034
    %v3182 = vadd.f32 %v2832, %v3039
    %v3183 = vadd.f32 %v2833, %v3044
    %v3184 = vadd.f32 %v2834, %v3049
    %v3185 = vadd.f32 %v2835, %v3054
    %v3186 = vadd.f32 %v2836, %v3059
    %v3187 = vadd.f32 %v2837, %v3064
    %v3188 = vadd.f32 %v2838, %v3069
    %v3189 = vadd.f32 %v2839, %v3074
    %v3190 = vadd.f32 %v2840, %v3079
    %v3191 = vadd.f32 %v2841, %v3084
    %v3192 = vadd.f32 %v2842, %v3089
    %v3193 = vadd.f32 %v2843, %v3094
    %v3194 = vadd.f32 %v2844, %v3099
    %v3195 = vadd.f32 %v2845, %v3104
    %v3196 = vadd.f32 %v2846, %v3109
    %v3197 = vadd.f32 %v2847, %v3114
    %v3198 = vadd.f32 %v2848, %v3119
    %v3199 = vadd.f32 %v2849, %v3124
    %v3200 = vadd.f32 %v2850, %v3129
    %v3201 = vadd.f32 %v2851, %v3134
    %v3202 = vadd.f32 %v2852, %v3139
    %v3203 = vadd.f32 %v2853, %v3144
    %v3204 = vadd.f32 %v2854, %v3149
    %v3205 = vadd.f32 %v2855, %v3154
    %3206 = vst.msk [vmem:[%s5] sm:$0xff] %vm1255, %v3156
    %3207 = vst.msk [vmem:[%s5 + $0x8] sm:$0xff] %vm1255, %v3157
    %3208 = vst.msk [vmem:[%s5 + $0x10] sm:$0xff] %vm1255, %v3158
    %3209 = vst.msk [vmem:[%s5 + $0x18] sm:$0xff] %vm1255, %v3159
    %3210 = vst.msk [vmem:[%s5 + $0x20] sm:$0xff] %vm1255, %v3160
    %3211 = vst.msk [vmem:[%s5 + $0x28] sm:$0xff] %vm1255, %v3161
    %3212 = vst.msk [vmem:[%s5 + $0x30] sm:$0xff] %vm1255, %v3162
    %3213 = vst.msk [vmem:[%s5 + $0x38] sm:$0xff] %vm1255, %v3163
    %3214 = vst.msk [vmem:[%s5 + $0x40] sm:$0xff] %vm1255, %v3164
    %3215 = vst.msk [vmem:[%s5 + $0x48] sm:$0xff] %vm1255, %v3165
    %3216 = vst.msk [vmem:[%s5 + $0x50] sm:$0xff] %vm1255, %v3166
    %3217 = vst.msk [vmem:[%s5 + $0x58] sm:$0xff] %vm1255, %v3167
    %3218 = vst.msk [vmem:[%s5 + $0x60] sm:$0xff] %vm1255, %v3168
    %3219 = vst.msk [vmem:[%s5 + $0x68] sm:$0xff] %vm1255, %v3169
    %3220 = vst.msk [vmem:[%s5 + $0x70] sm:$0xff] %vm1255, %v3170
    %3221 = vst.msk [vmem:[%s5 + $0x78] sm:$0xff] %vm1255, %v3171
    %3222 = vst.msk [vmem:[%s5 + $0x80] sm:$0xff] %vm1255, %v3172
    %3223 = vst.msk [vmem:[%s5 + $0x88] sm:$0xff] %vm1255, %v3173
    %3224 = vst.msk [vmem:[%s5 + $0x90] sm:$0xff] %vm1255, %v3174
    %3225 = vst.msk [vmem:[%s5 + $0x98] sm:$0xff] %vm1255, %v3175
    %3226 = vst.msk [vmem:[%s5 + $0xa0] sm:$0xff] %vm1255, %v3176
    %3227 = vst.msk [vmem:[%s5 + $0xa8] sm:$0xff] %vm1255, %v3177
    %3228 = vst.msk [vmem:[%s5 + $0xb0] sm:$0xff] %vm1255, %v3178
    %3229 = vst.msk [vmem:[%s5 + $0xb8] sm:$0xff] %vm1255, %v3179
    %3230 = vst.msk [vmem:[%s5 + $0xc0] sm:$0xff] %vm1255, %v3180
    %3231 = vst.msk [vmem:[%s5 + $0xc8] sm:$0xff] %vm1255, %v3181
    %3232 = vst.msk [vmem:[%s5 + $0xd0] sm:$0xff] %vm1255, %v3182
    %3233 = vst.msk [vmem:[%s5 + $0xd8] sm:$0xff] %vm1255, %v3183
    %3234 = vst.msk [vmem:[%s5 + $0xe0] sm:$0xff] %vm1255, %v3184
    %3235 = vst.msk [vmem:[%s5 + $0xe8] sm:$0xff] %vm1255, %v3185
    %3236 = vst.msk [vmem:[%s5 + $0xf0] sm:$0xff] %vm1255, %v3186
    %3237 = vst.msk [vmem:[%s5 + $0xf8] sm:$0xff] %vm1255, %v3187
    %3238 = vst.msk [vmem:[%s5 + $0x100] sm:$0xff] %vm1255, %v3188
    %3239 = vst.msk [vmem:[%s5 + $0x108] sm:$0xff] %vm1255, %v3189
    %3240 = vst.msk [vmem:[%s5 + $0x110] sm:$0xff] %vm1255, %v3190
    %3241 = vst.msk [vmem:[%s5 + $0x118] sm:$0xff] %vm1255, %v3191
    %3242 = vst.msk [vmem:[%s5 + $0x120] sm:$0xff] %vm1255, %v3192
    %3243 = vst.msk [vmem:[%s5 + $0x128] sm:$0xff] %vm1255, %v3193
    %3244 = vst.msk [vmem:[%s5 + $0x130] sm:$0xff] %vm1255, %v3194
    %3245 = vst.msk [vmem:[%s5 + $0x138] sm:$0xff] %vm1255, %v3195
    %3246 = vst.msk [vmem:[%s5 + $0x140] sm:$0xff] %vm1255, %v3196
    %3247 = vst.msk [vmem:[%s5 + $0x148] sm:$0xff] %vm1255, %v3197
    %3248 = vst.msk [vmem:[%s5 + $0x150] sm:$0xff] %vm1255, %v3198
    %3249 = vst.msk [vmem:[%s5 + $0x158] sm:$0xff] %vm1255, %v3199
    %3250 = vst.msk [vmem:[%s5 + $0x160] sm:$0xff] %vm1255, %v3200
    %3251 = vst.msk [vmem:[%s5 + $0x168] sm:$0xff] %vm1255, %v3201
    %3252 = vst.msk [vmem:[%s5 + $0x170] sm:$0xff] %vm1255, %v3202
    %3253 = vst.msk [vmem:[%s5 + $0x178] sm:$0xff] %vm1255, %v3203
    %3254 = vst.msk [vmem:[%s5 + $0x180] sm:$0xff] %vm1255, %v3204
    %3255 = vst.msk [vmem:[%s5 + $0x188] sm:$0xff] %vm1255, %v3205
    // Predicated region
    $region26: #{tpu_custom_call.1} parent=1 // pred_check
      _
    $region27: #{tpu_custom_call.1} parent=1 // pred_check_branch
      %3257 = sbr.rel (0) target = $region29
    $region28: #{tpu_custom_call.1} parent=1 // pred_region
      _
    $region29: #{tpu_custom_call.1} parent=1 // pred_fallthru
      _
    // Predicated region
    $region30: #{tpu_custom_call.1} parent=1 // pred_check
      _
    $region31: #{tpu_custom_call.1} parent=1 // pred_check_branch
      %3259 = sbr.rel (0) target = $region33
    $region32: #{tpu_custom_call.1} parent=1 // pred_region
      _
    $region33: #{tpu_custom_call.1} parent=1 // pred_fallthru
      _
    %3260 = vsyncpa [#allocation3], 1

</llo_original>
